<compile_context>
chip_gen: v6e
topology: v6e:2x2x1
jax: 0.10.0
libtpu: 0.0.40
codegen_flags: <defaults>
</compile_context>

<pallas_src>
import functools

import jax
import jax.numpy as jnp
from jax.experimental import pallas as pl
from jax.experimental.pallas import tpu as pltpu


def _round_up(x: int, m: int) -> int:
    return (x + m - 1) // m * m


def _pad_dim(d: int) -> int:
    # Lane-dense (multiple of 128) for realistically sized dims; minimal
    # sublane padding (multiple of 8) for tiny dims such as the demo's
    # C=4 / Cout=8 (per review: don't write 128 lanes when only 8 are real).
    # TODO(synk): consider 256-multiples on v6e/v7x when they divide cleanly.
    return _round_up(d, 128) if d >= 128 else _round_up(d, 8)


def xnorpp_sttn_kernel(x_ref, w_ref, alpha_ref, o_ref, *, tl, shifts):
    """One step: flat output rows [r*tl, (r+1)*tl) of image n.

    x_ref:     (1, Lp, C_pad)            bf16  sign(x), zero-padded, rows flattened
    w_ref:     (kh*kw, C_pad, Cout_pad)  bf16  ternary weights, one slice per tap
    alpha_ref: (1, Cout_pad)             f32   per-output-channel scale
    o_ref:     (1, tl, Cout_pad)         f32   flat output block
    """
    r = pl.program_id(1)
    base = pl.multiple_of(r * tl, 8)              # tl % 16 == 0 -> aligned start
    for t, s in enumerate(shifts):                # static python loop, kh*kw taps
        s_hi = (s // 8) * 8                       # aligned part of the tap shift
        s_lo = s - s_hi                           # sub-8 remainder (static)
        blk = x_ref[0, pl.ds(base + s_hi, tl + 8), :]   # aligned dynamic load
        a = blk[s_lo:s_lo + tl, :]                      # static sub-shift slice
        p = jnp.dot(a, w_ref[t], preferred_element_type=jnp.float32)
        if t == 0:
            o_ref[0] = p
        else:
            o_ref[0] += p
    o_ref[0] = o_ref[0] * alpha_ref[...]


def conv2d_xnorpp_sttn(x, w1, w2, *, stride=1, padding=1, tl=None):
    """x: (N, C, H, W); w1, w2: (Cout, C, kh, kw). Returns (N, Cout, Ho, Wo)."""
    if stride != 1:
        raise NotImplementedError("stride != 1 is not supported by this fast path")
    N, C, H, W = x.shape
    C_out, _, kh, kw = w1.shape

    Hp, Wp = H + 2 * padding, W + 2 * padding
    Ho, Wo = Hp - kh + 1, Wp - kw + 1

    C_pad = _pad_dim(C)
    Cout_pad = _pad_dim(C_out)

    # Flat-offset implicit im2col: output position p = ho*Wp + wo reads input
    # flat row p + i*Wp + j for tap (i, j); columns wo in [Wo, Wp) are garbage
    # and are sliced off below.
    Lout = Ho * Wp
    shifts = tuple(i * Wp + j for i in range(kh) for j in range(kw))
    S = shifts[-1]

    # Tiling: >= 8 grid steps total (>= 4 per TensorCore on dual-core chips),
    # output tile rows a multiple of 16, ~512 rows per step at large sizes.
    if tl is None:
        n_r = max(pl.cdiv(Lout, 512), pl.cdiv(8, N))
        tl = _round_up(pl.cdiv(Lout, n_r), 16)
    n_r = pl.cdiv(Lout, tl)
    Lout_pad = n_r * tl
    # Flat slab length: real data Hp*Wp plus room for the largest shifted,
    # 8-row over-fetched window of the last tile.
    Lp = _round_up(max(Hp * Wp, Lout_pad + S + 8), 8)

    # ---- activations: sign -> bf16 -> NHWC -> zero-pad -> flatten rows ------
    xs = jnp.sign(x).astype(jnp.bfloat16)                    # {-1,0,+1}, exact
    xs = jnp.transpose(xs, (0, 2, 3, 1))                     # NHWC
    xs = jnp.pad(xs, ((0, 0), (padding, padding), (padding, padding),
                      (0, C_pad - C)))
    xs = xs.reshape(N, Hp * Wp, C_pad)
    xs = jnp.pad(xs, ((0, 0), (0, Lp - Hp * Wp), (0, 0)))

    # ---- parameters: ternarize + per-channel scale, once, in the wrapper ----
    w_ter = ((jnp.sign(w1) + jnp.sign(w2)) * 0.5).astype(jnp.bfloat16)  # exact
    w_taps = jnp.transpose(w_ter, (2, 3, 1, 0)).reshape(kh * kw, C, C_out)
    w_taps = jnp.pad(w_taps, ((0, 0), (0, C_pad - C), (0, Cout_pad - C_out)))

    alpha = (jnp.mean(jnp.abs(w1), axis=(1, 2, 3)) +
             jnp.mean(jnp.abs(w2), axis=(1, 2, 3))).astype(jnp.float32)
    alpha = jnp.pad(alpha.reshape(1, C_out), ((0, 0), (0, Cout_pad - C_out)))

    # ---- VMEM budget (double-buffered blocks, lane-padded estimate) ---------
    lane = lambda d: _round_up(d, 128)
    est = (2 * Lp * lane(C_pad) * 2
           + 2 * kh * kw * _round_up(C_pad, 8) * lane(Cout_pad) * 2
           + 2 * tl * lane(Cout_pad) * 4
           + (2 << 20))
    vmem_limit = int(min(max(est, 32 * 1024 * 1024), 64 * 1024 * 1024))

    kernel = functools.partial(xnorpp_sttn_kernel, tl=tl, shifts=shifts)
    out = pl.pallas_call(
        kernel,
        out_shape=jax.ShapeDtypeStruct((N, Lout_pad, Cout_pad), jnp.float32),
        grid_spec=pltpu.PrefetchScalarGridSpec(
            num_scalar_prefetch=0,
            grid=(N, n_r),
            in_specs=[
                # whole padded image, resident across the r axis
                # (index map ignores r -> fetched once per image)
                pl.BlockSpec((1, Lp, C_pad), lambda n, r: (n, 0, 0)),
                # ternary weight taps + alpha: constant block, never re-fetched
                pl.BlockSpec((kh * kw, C_pad, Cout_pad), lambda n, r: (0, 0, 0)),
                pl.BlockSpec((1, Cout_pad), lambda n, r: (0, 0)),
            ],
            out_specs=pl.BlockSpec((1, tl, Cout_pad), lambda n, r: (n, r, 0)),
        ),
        compiler_params=pltpu.CompilerParams(
            dimension_semantics=("parallel", "parallel"),
            vmem_limit_bytes=vmem_limit,
        ),
    )(xs, w_taps, alpha)

    # drop garbage columns / padding, back to NCHW
    out = out[:, :Lout, :C_out].reshape(N, Ho, Wp, C_out)[:, :, :Wo, :]
    out = out.transpose(0, 3, 1, 2)
    return out.astype(x.dtype)


if __name__ == "__main__":
    # Deterministic synthetic parameters / inputs (no checkpoint loading).
    key = jax.random.PRNGKey(0)
    kx, k1, k2 = jax.random.split(key, 3)

    N, C_in, H, W = 2, 4, 16, 16
    C_out, ksz = 8, 3

    x = jax.random.normal(kx, (N, C_in, H, W), dtype=jnp.float32)
    w1 = jax.random.normal(k1, (C_out, C_in, ksz, ksz), dtype=jnp.float32) * 0.1
    w2 = jax.random.normal(k2, (C_out, C_in, ksz, ksz), dtype=jnp.float32) * 0.1

    out = conv2d_xnorpp_sttn(x, w1, w2, stride=1, padding=1)
    out = jax.block_until_ready(out)

    # Pure-JAX reference (same semantics as the PyTorch forward).
    w_ter = (jnp.sign(w1) + jnp.sign(w2)) * 0.5
    ref = jax.lax.conv_general_dilated(
        jnp.sign(x), w_ter, window_strides=(1, 1), padding=((1, 1), (1, 1)),
        dimension_numbers=("NCHW", "OIHW", "NCHW"))
    alpha = (jnp.mean(jnp.abs(w1), axis=(1, 2, 3)) +
             jnp.mean(jnp.abs(w2), axis=(1, 2, 3))).reshape(1, C_out, 1, 1)
    ref = ref * alpha

    assert out.shape == (N, C_out, H, W)
    assert jnp.allclose(out, ref, atol=1e-4, rtol=1e-4), "mismatch vs reference"

    print("KERNEL_OK")
</pallas_src>

<mosaic_0001>
module attributes {stable_mosaic.version = 11 : i64} {
  func.func @xnorpp_sttn_kernel(%arg0: i32, %arg1: i32, %arg2: memref<1x368x8xbf16, #tpu.memory_space<vmem>>, %arg3: memref<9x8x8xbf16, #tpu.memory_space<vmem>>, %arg4: memref<1x8xf32, #tpu.memory_space<vmem>>, %arg5: memref<1x80x8xf32, #tpu.memory_space<vmem>>) attributes {dimension_semantics = [#tpu.dimension_semantics<parallel>, #tpu.dimension_semantics<parallel>], iteration_bounds = array<i64: 2, 4>, scalar_prefetch = 0 : i64, scratch_operands = 0 : i64, tpu.core_type = #tpu.core_type<tc>, window_params = [{transform_indices = @transform_0, window_bounds = array<i64: 1, 368, 8>}, {pipeline_mode = #tpu.pipeline_mode<synchronous>, transform_indices = @transform_1, window_bounds = array<i64: 9, 8, 8>}, {pipeline_mode = #tpu.pipeline_mode<synchronous>, transform_indices = @transform_2, window_bounds = array<i64: 1, 8>}, {transform_indices = @transform_3, window_bounds = array<i64: 1, 80, 8>}]} {
    %c80_i32 = arith.constant 80 : i32
    %0 = arith.muli %arg1, %c80_i32 : i32
    %1 = tpu.assume_multiple %0, 8 : i32
    %c0_i32 = arith.constant 0 : i32
    %2 = arith.addi %1, %c0_i32 : i32
    %c0 = arith.constant 0 : index
    %3 = arith.index_cast %2 : i32 to index
    %c0_0 = arith.constant 0 : index
    %4 = vector.load %arg2[%c0, %3, %c0_0] : memref<1x368x8xbf16, #tpu.memory_space<vmem>>, vector<1x88x8xbf16>
    %5 = vector.shape_cast %4 : vector<1x88x8xbf16> to vector<88x8xbf16>
    %6 = vector.extract_strided_slice %5 {offsets = [0, 0], sizes = [80, 8], strides = [1, 1]} : vector<88x8xbf16> to vector<80x8xbf16>
    %c0_1 = arith.constant 0 : index
    %c0_2 = arith.constant 0 : index
    %c0_3 = arith.constant 0 : index
    %7 = vector.load %arg3[%c0_1, %c0_2, %c0_3] : memref<9x8x8xbf16, #tpu.memory_space<vmem>>, vector<1x8x8xbf16>
    %8 = vector.shape_cast %7 : vector<1x8x8xbf16> to vector<8x8xbf16>
    %cst = arith.constant dense<0.000000e+00> : vector<80x8xf32>
    %9 = tpu.matmul %6, %8, %cst {dimension_numbers = #tpu.dot_dimension_numbers<[1], [0], [0], [1], [0, 0, 1, 1], [], []>} : vector<80x8xbf16>, vector<8x8xbf16>, vector<80x8xf32> -> vector<80x8xf32>
    %c0_4 = arith.constant 0 : index
    %c0_5 = arith.constant 0 : index
    %c0_6 = arith.constant 0 : index
    %10 = vector.load %arg5[%c0_4, %c0_5, %c0_6] : memref<1x80x8xf32, #tpu.memory_space<vmem>>, vector<1x80x8xf32>
    %11 = vector.shape_cast %10 : vector<1x80x8xf32> to vector<80x8xf32>
    %12 = vector.shape_cast %9 : vector<80x8xf32> to vector<1x80x8xf32>
    tpu.vector_store %arg5[%c0_4, %c0_5, %c0_6], %12 {strides = array<i32>} : memref<1x80x8xf32, #tpu.memory_space<vmem>>, vector<1x80x8xf32>,
    %c0_i32_7 = arith.constant 0 : i32
    %13 = arith.addi %1, %c0_i32_7 : i32
    %c0_8 = arith.constant 0 : index
    %14 = arith.index_cast %13 : i32 to index
    %c0_9 = arith.constant 0 : index
    %15 = vector.load %arg2[%c0_8, %14, %c0_9] : memref<1x368x8xbf16, #tpu.memory_space<vmem>>, vector<1x88x8xbf16>
    %16 = vector.shape_cast %15 : vector<1x88x8xbf16> to vector<88x8xbf16>
    %17 = vector.extract_strided_slice %16 {offsets = [1, 0], sizes = [80, 8], strides = [1, 1]} : vector<88x8xbf16> to vector<80x8xbf16>
    %c1 = arith.constant 1 : index
    %c0_10 = arith.constant 0 : index
    %c0_11 = arith.constant 0 : index
    %18 = vector.load %arg3[%c1, %c0_10, %c0_11] : memref<9x8x8xbf16, #tpu.memory_space<vmem>>, vector<1x8x8xbf16>
    %19 = vector.shape_cast %18 : vector<1x8x8xbf16> to vector<8x8xbf16>
    %cst_12 = arith.constant dense<0.000000e+00> : vector<80x8xf32>
    %20 = tpu.matmul %17, %19, %cst_12 {dimension_numbers = #tpu.dot_dimension_numbers<[1], [0], [0], [1], [0, 0, 1, 1], [], []>} : vector<80x8xbf16>, vector<8x8xbf16>, vector<80x8xf32> -> vector<80x8xf32>
    %c0_13 = arith.constant 0 : index
    %c0_14 = arith.constant 0 : index
    %c0_15 = arith.constant 0 : index
    %21 = vector.load %arg5[%c0_13, %c0_14, %c0_15] : memref<1x80x8xf32, #tpu.memory_space<vmem>>, vector<1x80x8xf32>
    %22 = vector.shape_cast %21 : vector<1x80x8xf32> to vector<80x8xf32>
    %23 = arith.addf %22, %20 : vector<80x8xf32>
    %c0_16 = arith.constant 0 : index
    %c0_17 = arith.constant 0 : index
    %c0_18 = arith.constant 0 : index
    %24 = vector.load %arg5[%c0_16, %c0_17, %c0_18] : memref<1x80x8xf32, #tpu.memory_space<vmem>>, vector<1x80x8xf32>
    %25 = vector.shape_cast %24 : vector<1x80x8xf32> to vector<80x8xf32>
    %26 = vector.shape_cast %23 : vector<80x8xf32> to vector<1x80x8xf32>
    tpu.vector_store %arg5[%c0_16, %c0_17, %c0_18], %26 {strides = array<i32>} : memref<1x80x8xf32, #tpu.memory_space<vmem>>, vector<1x80x8xf32>,
    %c0_i32_19 = arith.constant 0 : i32
    %27 = arith.addi %1, %c0_i32_19 : i32
    %c0_20 = arith.constant 0 : index
    %28 = arith.index_cast %27 : i32 to index
    %c0_21 = arith.constant 0 : index
    %29 = vector.load %arg2[%c0_20, %28, %c0_21] : memref<1x368x8xbf16, #tpu.memory_space<vmem>>, vector<1x88x8xbf16>
    %30 = vector.shape_cast %29 : vector<1x88x8xbf16> to vector<88x8xbf16>
    %31 = vector.extract_strided_slice %30 {offsets = [2, 0], sizes = [80, 8], strides = [1, 1]} : vector<88x8xbf16> to vector<80x8xbf16>
    %c2 = arith.constant 2 : index
    %c0_22 = arith.constant 0 : index
    %c0_23 = arith.constant 0 : index
    %32 = vector.load %arg3[%c2, %c0_22, %c0_23] : memref<9x8x8xbf16, #tpu.memory_space<vmem>>, vector<1x8x8xbf16>
    %33 = vector.shape_cast %32 : vector<1x8x8xbf16> to vector<8x8xbf16>
    %cst_24 = arith.constant dense<0.000000e+00> : vector<80x8xf32>
    %34 = tpu.matmul %31, %33, %cst_24 {dimension_numbers = #tpu.dot_dimension_numbers<[1], [0], [0], [1], [0, 0, 1, 1], [], []>} : vector<80x8xbf16>, vector<8x8xbf16>, vector<80x8xf32> -> vector<80x8xf32>
    %c0_25 = arith.constant 0 : index
    %c0_26 = arith.constant 0 : index
    %c0_27 = arith.constant 0 : index
    %35 = vector.load %arg5[%c0_25, %c0_26, %c0_27] : memref<1x80x8xf32, #tpu.memory_space<vmem>>, vector<1x80x8xf32>
    %36 = vector.shape_cast %35 : vector<1x80x8xf32> to vector<80x8xf32>
    %37 = arith.addf %36, %34 : vector<80x8xf32>
    %c0_28 = arith.constant 0 : index
    %c0_29 = arith.constant 0 : index
    %c0_30 = arith.constant 0 : index
    %38 = vector.load %arg5[%c0_28, %c0_29, %c0_30] : memref<1x80x8xf32, #tpu.memory_space<vmem>>, vector<1x80x8xf32>
    %39 = vector.shape_cast %38 : vector<1x80x8xf32> to vector<80x8xf32>
    %40 = vector.shape_cast %37 : vector<80x8xf32> to vector<1x80x8xf32>
    tpu.vector_store %arg5[%c0_28, %c0_29, %c0_30], %40 {strides = array<i32>} : memref<1x80x8xf32, #tpu.memory_space<vmem>>, vector<1x80x8xf32>,
    %c16_i32 = arith.constant 16 : i32
    %41 = arith.addi %1, %c16_i32 : i32
    %c0_31 = arith.constant 0 : index
    %42 = arith.index_cast %41 : i32 to index
    %c0_32 = arith.constant 0 : index
    %43 = vector.load %arg2[%c0_31, %42, %c0_32] : memref<1x368x8xbf16, #tpu.memory_space<vmem>>, vector<1x88x8xbf16>
    %44 = vector.shape_cast %43 : vector<1x88x8xbf16> to vector<88x8xbf16>
    %45 = vector.extract_strided_slice %44 {offsets = [2, 0], sizes = [80, 8], strides = [1, 1]} : vector<88x8xbf16> to vector<80x8xbf16>
    %c3 = arith.constant 3 : index
    %c0_33 = arith.constant 0 : index
    %c0_34 = arith.constant 0 : index
    %46 = vector.load %arg3[%c3, %c0_33, %c0_34] : memref<9x8x8xbf16, #tpu.memory_space<vmem>>, vector<1x8x8xbf16>
    %47 = vector.shape_cast %46 : vector<1x8x8xbf16> to vector<8x8xbf16>
    %cst_35 = arith.constant dense<0.000000e+00> : vector<80x8xf32>
    %48 = tpu.matmul %45, %47, %cst_35 {dimension_numbers = #tpu.dot_dimension_numbers<[1], [0], [0], [1], [0, 0, 1, 1], [], []>} : vector<80x8xbf16>, vector<8x8xbf16>, vector<80x8xf32> -> vector<80x8xf32>
    %c0_36 = arith.constant 0 : index
    %c0_37 = arith.constant 0 : index
    %c0_38 = arith.constant 0 : index
    %49 = vector.load %arg5[%c0_36, %c0_37, %c0_38] : memref<1x80x8xf32, #tpu.memory_space<vmem>>, vector<1x80x8xf32>
    %50 = vector.shape_cast %49 : vector<1x80x8xf32> to vector<80x8xf32>
    %51 = arith.addf %50, %48 : vector<80x8xf32>
    %c0_39 = arith.constant 0 : index
    %c0_40 = arith.constant 0 : index
    %c0_41 = arith.constant 0 : index
    %52 = vector.load %arg5[%c0_39, %c0_40, %c0_41] : memref<1x80x8xf32, #tpu.memory_space<vmem>>, vector<1x80x8xf32>
    %53 = vector.shape_cast %52 : vector<1x80x8xf32> to vector<80x8xf32>
    %54 = vector.shape_cast %51 : vector<80x8xf32> to vector<1x80x8xf32>
    tpu.vector_store %arg5[%c0_39, %c0_40, %c0_41], %54 {strides = array<i32>} : memref<1x80x8xf32, #tpu.memory_space<vmem>>, vector<1x80x8xf32>,
    %c16_i32_42 = arith.constant 16 : i32
    %55 = arith.addi %1, %c16_i32_42 : i32
    %c0_43 = arith.constant 0 : index
    %56 = arith.index_cast %55 : i32 to index
    %c0_44 = arith.constant 0 : index
    %57 = vector.load %arg2[%c0_43, %56, %c0_44] : memref<1x368x8xbf16, #tpu.memory_space<vmem>>, vector<1x88x8xbf16>
    %58 = vector.shape_cast %57 : vector<1x88x8xbf16> to vector<88x8xbf16>
    %59 = vector.extract_strided_slice %58 {offsets = [3, 0], sizes = [80, 8], strides = [1, 1]} : vector<88x8xbf16> to vector<80x8xbf16>
    %c4 = arith.constant 4 : index
    %c0_45 = arith.constant 0 : index
    %c0_46 = arith.constant 0 : index
    %60 = vector.load %arg3[%c4, %c0_45, %c0_46] : memref<9x8x8xbf16, #tpu.memory_space<vmem>>, vector<1x8x8xbf16>
    %61 = vector.shape_cast %60 : vector<1x8x8xbf16> to vector<8x8xbf16>
    %cst_47 = arith.constant dense<0.000000e+00> : vector<80x8xf32>
    %62 = tpu.matmul %59, %61, %cst_47 {dimension_numbers = #tpu.dot_dimension_numbers<[1], [0], [0], [1], [0, 0, 1, 1], [], []>} : vector<80x8xbf16>, vector<8x8xbf16>, vector<80x8xf32> -> vector<80x8xf32>
    %c0_48 = arith.constant 0 : index
    %c0_49 = arith.constant 0 : index
    %c0_50 = arith.constant 0 : index
    %63 = vector.load %arg5[%c0_48, %c0_49, %c0_50] : memref<1x80x8xf32, #tpu.memory_space<vmem>>, vector<1x80x8xf32>
    %64 = vector.shape_cast %63 : vector<1x80x8xf32> to vector<80x8xf32>
    %65 = arith.addf %64, %62 : vector<80x8xf32>
    %c0_51 = arith.constant 0 : index
    %c0_52 = arith.constant 0 : index
    %c0_53 = arith.constant 0 : index
    %66 = vector.load %arg5[%c0_51, %c0_52, %c0_53] : memref<1x80x8xf32, #tpu.memory_space<vmem>>, vector<1x80x8xf32>
    %67 = vector.shape_cast %66 : vector<1x80x8xf32> to vector<80x8xf32>
    %68 = vector.shape_cast %65 : vector<80x8xf32> to vector<1x80x8xf32>
    tpu.vector_store %arg5[%c0_51, %c0_52, %c0_53], %68 {strides = array<i32>} : memref<1x80x8xf32, #tpu.memory_space<vmem>>, vector<1x80x8xf32>,
    %c16_i32_54 = arith.constant 16 : i32
    %69 = arith.addi %1, %c16_i32_54 : i32
    %c0_55 = arith.constant 0 : index
    %70 = arith.index_cast %69 : i32 to index
    %c0_56 = arith.constant 0 : index
    %71 = vector.load %arg2[%c0_55, %70, %c0_56] : memref<1x368x8xbf16, #tpu.memory_space<vmem>>, vector<1x88x8xbf16>
    %72 = vector.shape_cast %71 : vector<1x88x8xbf16> to vector<88x8xbf16>
    %73 = vector.extract_strided_slice %72 {offsets = [4, 0], sizes = [80, 8], strides = [1, 1]} : vector<88x8xbf16> to vector<80x8xbf16>
    %c5 = arith.constant 5 : index
    %c0_57 = arith.constant 0 : index
    %c0_58 = arith.constant 0 : index
    %74 = vector.load %arg3[%c5, %c0_57, %c0_58] : memref<9x8x8xbf16, #tpu.memory_space<vmem>>, vector<1x8x8xbf16>
    %75 = vector.shape_cast %74 : vector<1x8x8xbf16> to vector<8x8xbf16>
    %cst_59 = arith.constant dense<0.000000e+00> : vector<80x8xf32>
    %76 = tpu.matmul %73, %75, %cst_59 {dimension_numbers = #tpu.dot_dimension_numbers<[1], [0], [0], [1], [0, 0, 1, 1], [], []>} : vector<80x8xbf16>, vector<8x8xbf16>, vector<80x8xf32> -> vector<80x8xf32>
    %c0_60 = arith.constant 0 : index
    %c0_61 = arith.constant 0 : index
    %c0_62 = arith.constant 0 : index
    %77 = vector.load %arg5[%c0_60, %c0_61, %c0_62] : memref<1x80x8xf32, #tpu.memory_space<vmem>>, vector<1x80x8xf32>
    %78 = vector.shape_cast %77 : vector<1x80x8xf32> to vector<80x8xf32>
    %79 = arith.addf %78, %76 : vector<80x8xf32>
    %c0_63 = arith.constant 0 : index
    %c0_64 = arith.constant 0 : index
    %c0_65 = arith.constant 0 : index
    %80 = vector.load %arg5[%c0_63, %c0_64, %c0_65] : memref<1x80x8xf32, #tpu.memory_space<vmem>>, vector<1x80x8xf32>
    %81 = vector.shape_cast %80 : vector<1x80x8xf32> to vector<80x8xf32>
    %82 = vector.shape_cast %79 : vector<80x8xf32> to vector<1x80x8xf32>
    tpu.vector_store %arg5[%c0_63, %c0_64, %c0_65], %82 {strides = array<i32>} : memref<1x80x8xf32, #tpu.memory_space<vmem>>, vector<1x80x8xf32>,
    %c32_i32 = arith.constant 32 : i32
    %83 = arith.addi %1, %c32_i32 : i32
    %c0_66 = arith.constant 0 : index
    %84 = arith.index_cast %83 : i32 to index
    %c0_67 = arith.constant 0 : index
    %85 = vector.load %arg2[%c0_66, %84, %c0_67] : memref<1x368x8xbf16, #tpu.memory_space<vmem>>, vector<1x88x8xbf16>
    %86 = vector.shape_cast %85 : vector<1x88x8xbf16> to vector<88x8xbf16>
    %87 = vector.extract_strided_slice %86 {offsets = [4, 0], sizes = [80, 8], strides = [1, 1]} : vector<88x8xbf16> to vector<80x8xbf16>
    %c6 = arith.constant 6 : index
    %c0_68 = arith.constant 0 : index
    %c0_69 = arith.constant 0 : index
    %88 = vector.load %arg3[%c6, %c0_68, %c0_69] : memref<9x8x8xbf16, #tpu.memory_space<vmem>>, vector<1x8x8xbf16>
    %89 = vector.shape_cast %88 : vector<1x8x8xbf16> to vector<8x8xbf16>
    %cst_70 = arith.constant dense<0.000000e+00> : vector<80x8xf32>
    %90 = tpu.matmul %87, %89, %cst_70 {dimension_numbers = #tpu.dot_dimension_numbers<[1], [0], [0], [1], [0, 0, 1, 1], [], []>} : vector<80x8xbf16>, vector<8x8xbf16>, vector<80x8xf32> -> vector<80x8xf32>
    %c0_71 = arith.constant 0 : index
    %c0_72 = arith.constant 0 : index
    %c0_73 = arith.constant 0 : index
    %91 = vector.load %arg5[%c0_71, %c0_72, %c0_73] : memref<1x80x8xf32, #tpu.memory_space<vmem>>, vector<1x80x8xf32>
    %92 = vector.shape_cast %91 : vector<1x80x8xf32> to vector<80x8xf32>
    %93 = arith.addf %92, %90 : vector<80x8xf32>
    %c0_74 = arith.constant 0 : index
    %c0_75 = arith.constant 0 : index
    %c0_76 = arith.constant 0 : index
    %94 = vector.load %arg5[%c0_74, %c0_75, %c0_76] : memref<1x80x8xf32, #tpu.memory_space<vmem>>, vector<1x80x8xf32>
    %95 = vector.shape_cast %94 : vector<1x80x8xf32> to vector<80x8xf32>
    %96 = vector.shape_cast %93 : vector<80x8xf32> to vector<1x80x8xf32>
    tpu.vector_store %arg5[%c0_74, %c0_75, %c0_76], %96 {strides = array<i32>} : memref<1x80x8xf32, #tpu.memory_space<vmem>>, vector<1x80x8xf32>,
    %c32_i32_77 = arith.constant 32 : i32
    %97 = arith.addi %1, %c32_i32_77 : i32
    %c0_78 = arith.constant 0 : index
    %98 = arith.index_cast %97 : i32 to index
    %c0_79 = arith.constant 0 : index
    %99 = vector.load %arg2[%c0_78, %98, %c0_79] : memref<1x368x8xbf16, #tpu.memory_space<vmem>>, vector<1x88x8xbf16>
    %100 = vector.shape_cast %99 : vector<1x88x8xbf16> to vector<88x8xbf16>
    %101 = vector.extract_strided_slice %100 {offsets = [5, 0], sizes = [80, 8], strides = [1, 1]} : vector<88x8xbf16> to vector<80x8xbf16>
    %c7 = arith.constant 7 : index
    %c0_80 = arith.constant 0 : index
    %c0_81 = arith.constant 0 : index
    %102 = vector.load %arg3[%c7, %c0_80, %c0_81] : memref<9x8x8xbf16, #tpu.memory_space<vmem>>, vector<1x8x8xbf16>
    %103 = vector.shape_cast %102 : vector<1x8x8xbf16> to vector<8x8xbf16>
    %cst_82 = arith.constant dense<0.000000e+00> : vector<80x8xf32>
    %104 = tpu.matmul %101, %103, %cst_82 {dimension_numbers = #tpu.dot_dimension_numbers<[1], [0], [0], [1], [0, 0, 1, 1], [], []>} : vector<80x8xbf16>, vector<8x8xbf16>, vector<80x8xf32> -> vector<80x8xf32>
    %c0_83 = arith.constant 0 : index
    %c0_84 = arith.constant 0 : index
    %c0_85 = arith.constant 0 : index
    %105 = vector.load %arg5[%c0_83, %c0_84, %c0_85] : memref<1x80x8xf32, #tpu.memory_space<vmem>>, vector<1x80x8xf32>
    %106 = vector.shape_cast %105 : vector<1x80x8xf32> to vector<80x8xf32>
    %107 = arith.addf %106, %104 : vector<80x8xf32>
    %c0_86 = arith.constant 0 : index
    %c0_87 = arith.constant 0 : index
    %c0_88 = arith.constant 0 : index
    %108 = vector.load %arg5[%c0_86, %c0_87, %c0_88] : memref<1x80x8xf32, #tpu.memory_space<vmem>>, vector<1x80x8xf32>
    %109 = vector.shape_cast %108 : vector<1x80x8xf32> to vector<80x8xf32>
    %110 = vector.shape_cast %107 : vector<80x8xf32> to vector<1x80x8xf32>
    tpu.vector_store %arg5[%c0_86, %c0_87, %c0_88], %110 {strides = array<i32>} : memref<1x80x8xf32, #tpu.memory_space<vmem>>, vector<1x80x8xf32>,
    %c32_i32_89 = arith.constant 32 : i32
    %111 = arith.addi %1, %c32_i32_89 : i32
    %c0_90 = arith.constant 0 : index
    %112 = arith.index_cast %111 : i32 to index
    %c0_91 = arith.constant 0 : index
    %113 = vector.load %arg2[%c0_90, %112, %c0_91] : memref<1x368x8xbf16, #tpu.memory_space<vmem>>, vector<1x88x8xbf16>
    %114 = vector.shape_cast %113 : vector<1x88x8xbf16> to vector<88x8xbf16>
    %115 = vector.extract_strided_slice %114 {offsets = [6, 0], sizes = [80, 8], strides = [1, 1]} : vector<88x8xbf16> to vector<80x8xbf16>
    %c8 = arith.constant 8 : index
    %c0_92 = arith.constant 0 : index
    %c0_93 = arith.constant 0 : index
    %116 = vector.load %arg3[%c8, %c0_92, %c0_93] : memref<9x8x8xbf16, #tpu.memory_space<vmem>>, vector<1x8x8xbf16>
    %117 = vector.shape_cast %116 : vector<1x8x8xbf16> to vector<8x8xbf16>
    %cst_94 = arith.constant dense<0.000000e+00> : vector<80x8xf32>
    %118 = tpu.matmul %115, %117, %cst_94 {dimension_numbers = #tpu.dot_dimension_numbers<[1], [0], [0], [1], [0, 0, 1, 1], [], []>} : vector<80x8xbf16>, vector<8x8xbf16>, vector<80x8xf32> -> vector<80x8xf32>
    %c0_95 = arith.constant 0 : index
    %c0_96 = arith.constant 0 : index
    %c0_97 = arith.constant 0 : index
    %119 = vector.load %arg5[%c0_95, %c0_96, %c0_97] : memref<1x80x8xf32, #tpu.memory_space<vmem>>, vector<1x80x8xf32>
    %120 = vector.shape_cast %119 : vector<1x80x8xf32> to vector<80x8xf32>
    %121 = arith.addf %120, %118 : vector<80x8xf32>
    %c0_98 = arith.constant 0 : index
    %c0_99 = arith.constant 0 : index
    %c0_100 = arith.constant 0 : index
    %122 = vector.load %arg5[%c0_98, %c0_99, %c0_100] : memref<1x80x8xf32, #tpu.memory_space<vmem>>, vector<1x80x8xf32>
    %123 = vector.shape_cast %122 : vector<1x80x8xf32> to vector<80x8xf32>
    %124 = vector.shape_cast %121 : vector<80x8xf32> to vector<1x80x8xf32>
    tpu.vector_store %arg5[%c0_98, %c0_99, %c0_100], %124 {strides = array<i32>} : memref<1x80x8xf32, #tpu.memory_space<vmem>>, vector<1x80x8xf32>,
    %c0_101 = arith.constant 0 : index
    %c0_102 = arith.constant 0 : index
    %c0_103 = arith.constant 0 : index
    %125 = vector.load %arg5[%c0_101, %c0_102, %c0_103] : memref<1x80x8xf32, #tpu.memory_space<vmem>>, vector<1x80x8xf32>
    %126 = vector.shape_cast %125 : vector<1x80x8xf32> to vector<80x8xf32>
    %c0_104 = arith.constant 0 : index
    %c0_105 = arith.constant 0 : index
    %127 = vector.load %arg4[%c0_104, %c0_105] : memref<1x8xf32, #tpu.memory_space<vmem>>, vector<1x8xf32>
    %128 = vector.broadcast %127 : vector<1x8xf32> to vector<80x8xf32>
    %129 = arith.mulf %126, %128 : vector<80x8xf32>
    %c0_106 = arith.constant 0 : index
    %c0_107 = arith.constant 0 : index
    %c0_108 = arith.constant 0 : index
    %130 = vector.load %arg5[%c0_106, %c0_107, %c0_108] : memref<1x80x8xf32, #tpu.memory_space<vmem>>, vector<1x80x8xf32>
    %131 = vector.shape_cast %130 : vector<1x80x8xf32> to vector<80x8xf32>
    %132 = vector.shape_cast %129 : vector<80x8xf32> to vector<1x80x8xf32>
    tpu.vector_store %arg5[%c0_106, %c0_107, %c0_108], %132 {strides = array<i32>} : memref<1x80x8xf32, #tpu.memory_space<vmem>>, vector<1x80x8xf32>,
    return
  }
  func.func @transform_0(%arg0: i32, %arg1: i32) -> (i32, i32, i32) {
    %c0_i32 = arith.constant 0 : i32
    %c0_i32_0 = arith.constant 0 : i32
    %c0_i32_1 = arith.constant 0 : i32
    return %arg0, %c0_i32, %c0_i32_0 : i32, i32, i32
  }
  func.func @transform_1(%arg0: i32, %arg1: i32) -> (i32, i32, i32) {
    %c0_i32 = arith.constant 0 : i32
    %c0_i32_0 = arith.constant 0 : i32
    %c0_i32_1 = arith.constant 0 : i32
    %c0_i32_2 = arith.constant 0 : i32
    return %c0_i32, %c0_i32_0, %c0_i32_1 : i32, i32, i32
  }
  func.func @transform_2(%arg0: i32, %arg1: i32) -> (i32, i32) {
    %c0_i32 = arith.constant 0 : i32
    %c0_i32_0 = arith.constant 0 : i32
    %c0_i32_1 = arith.constant 0 : i32
    return %c0_i32, %c0_i32_0 : i32, i32
  }
  func.func @transform_3(%arg0: i32, %arg1: i32) -> (i32, i32, i32) {
    %c0_i32 = arith.constant 0 : i32
    %c0_i32_0 = arith.constant 0 : i32
    return %arg0, %arg1, %c0_i32 : i32, i32, i32
  }
}

</mosaic_0001>

<llo_original>
// kernel: tpu_custom_call.1
$region0: #{tpu_custom_call.1}
  #allocation0 [shape = 'u32[]', space=smem, size = 0x4, offset = 0x4, fixed_abs, tag = 'smem constant byte address 0x4 - core index']
  #allocation1 [shape = 'u32[144,128]{1,0:T(1,128)}', space=vmem, size = 0x12000, scoped, tag = 'internal scratch']
  %s0 = inlined_call_operand.vmem [shape: bf16[2,368,8], index: 0, kind: input, shape index: {}]
  %s1 = inlined_call_operand.vmem [shape: bf16[9,8,8], index: 1, kind: input, shape index: {}]
  %s2 = inlined_call_operand.vmem [shape: f32[1,8], index: 2, kind: input, shape index: {}]
  %s3 = inlined_call_operand.vmem [shape: f32[2,320,8], index: 3, kind: output, shape index: {}]
  %s4 = sld [smem:[#allocation0]]
  $region45: #{tpu_custom_call.1} parent=0
    _
  %s6 = ssub.s32 1, %s4
  %s7 = scalar_select 0, %s6, %s4
  loop: start=0, step=1, limit=10
  $region2: #{tpu_custom_call.1} parent=0 // loop_pre_header
    _
  $region3: #{tpu_custom_call.1} parent=0 // loop_header
    %s9 = sphi 0, %s13
    %p10 = scmp.ge.s32.totalorder %s9, 10
    %s16 = sphi 0, %s28
    %s17 = sphi 0, %s24
    %s18 = sphi 0, %s16
    %s19 = sphi 0, %s17
    %s20 = sphi 0, %s18
    %s21 = sphi 0, %s19
    %s31 = sphi 0, %s33
    %s34 = sphi 0, %s31
    %s35 = sphi 0, %s34
    %s51 = sphi 0, %s35
    %s55 = sphi 0, %s55
    %s57 = sphi 0, %s55
    %s58 = sphi 0, %s57
    %s72 = sphi 0, %s58
    %s76 = sphi 0, %s76
    %s78 = sphi 0, %s76
    %s79 = sphi 0, %s78
    %s93 = sphi 0, %s79
    %s101 = sphi 0, %s103
    %s104 = sphi 0, %s101
    %s105 = sphi 0, %s104
    %s121 = sphi 0, %s105
  $region4: #{tpu_custom_call.1} parent=0 // loop_header_branch
    %12 = sbr.rel (%p10) target = $region8
  $region5: #{tpu_custom_call.1} parent=0 // loop_body
    %s14 = ssub.s32 %s9, 1
    %s15 = ssub.s32 %s9, 2
    %s22 = sadd.s32 1, %s17
    %p23 = scmp.ge.s32.totalorder %s22, 4
    %s24 = scalar_select %p23, 0, %s22
    %s25 = sadd.s32 1, %s16
    %s26 = scalar_select %p23, %s25, %s16
    %p27 = scmp.ge.s32.totalorder %s26, 2
    %s28 = scalar_select %p27, 0, %s26
    %s29 = ssub.s32 %s16, %s28
    %p30 = scmp.eq.s32.totalorder %s29, 0
    %s32 = sadd.s32 %s31, 1
    %s33 = scalar_select %p30, %s31, %s32
    %p36 = pneg %p30
    %p37 = scmp.eq.s32.totalorder %s9, 7
    %p38 = por %p36, %p37
    %p39 = scmp.ne.s32.totalorder %s31, %s34
    %p40 = scmp.eq.s32.totalorder %s9, 0
    %p41 = por %p39, %p40
    %p42 = scmp.ne.s32.totalorder %s31, %s34
    %p43 = scmp.eq.s32.totalorder %s14, 7
    %p44 = por %p42, %p43
    %p45 = scmp.ne.s32.totalorder %s34, %s35
    %p46 = scmp.eq.s32.totalorder %s14, 0
    %p47 = por %p45, %p46
    %p48 = scmp.ne.s32.totalorder %s34, %s35
    %p49 = scmp.eq.s32.totalorder %s15, 7
    %p50 = por %p48, %p49
    %p52 = scmp.ne.s32.totalorder %s35, %s51
    %p53 = scmp.eq.s32.totalorder %s15, 0
    %p54 = por %p52, %p53
    %s56 = sadd.s32 %s55, 1
    %p59 = scmp.eq.s32.totalorder %s9, 7
    %p60 = scmp.ne.s32.totalorder %s55, %s57
    %p61 = scmp.eq.s32.totalorder %s9, 0
    %p62 = por %p60, %p61
    %p63 = scmp.ne.s32.totalorder %s55, %s57
    %p64 = scmp.eq.s32.totalorder %s14, 7
    %p65 = por %p63, %p64
    %p66 = scmp.ne.s32.totalorder %s57, %s58
    %p67 = scmp.eq.s32.totalorder %s14, 0
    %p68 = por %p66, %p67
    %p69 = scmp.ne.s32.totalorder %s57, %s58
    %p70 = scmp.eq.s32.totalorder %s15, 7
    %p71 = por %p69, %p70
    %p73 = scmp.ne.s32.totalorder %s58, %s72
    %p74 = scmp.eq.s32.totalorder %s15, 0
    %p75 = por %p73, %p74
    %s77 = sadd.s32 %s76, 1
    %p80 = scmp.eq.s32.totalorder %s9, 7
    %p81 = scmp.ne.s32.totalorder %s76, %s78
    %p82 = scmp.eq.s32.totalorder %s9, 0
    %p83 = por %p81, %p82
    %p84 = scmp.ne.s32.totalorder %s76, %s78
    %p85 = scmp.eq.s32.totalorder %s14, 7
    %p86 = por %p84, %p85
    %p87 = scmp.ne.s32.totalorder %s78, %s79
    %p88 = scmp.eq.s32.totalorder %s14, 0
    %p89 = por %p87, %p88
    %p90 = scmp.ne.s32.totalorder %s78, %s79
    %p91 = scmp.eq.s32.totalorder %s15, 7
    %p92 = por %p90, %p91
    %p94 = scmp.ne.s32.totalorder %s79, %s93
    %p95 = scmp.eq.s32.totalorder %s15, 0
    %p96 = por %p94, %p95
    %s97 = ssub.s32 %s16, %s28
    %s98 = ssub.s32 %s17, %s24
    %s99 = sor.u32 %s97, %s98
    %p100 = scmp.eq.s32.totalorder %s99, 0
    %s102 = sadd.s32 %s101, 1
    %s103 = scalar_select %p100, %s101, %s102
    %p106 = pneg %p100
    %p107 = scmp.eq.s32.totalorder %s9, 7
    %p108 = por %p106, %p107
    %p109 = scmp.ne.s32.totalorder %s101, %s104
    %p110 = scmp.eq.s32.totalorder %s9, 0
    %p111 = por %p109, %p110
    %p112 = scmp.ne.s32.totalorder %s101, %s104
    %p113 = scmp.eq.s32.totalorder %s14, 7
    %p114 = por %p112, %p113
    %p115 = scmp.ne.s32.totalorder %s104, %s105
    %p116 = scmp.eq.s32.totalorder %s14, 0
    %p117 = por %p115, %p116
    %p118 = scmp.ne.s32.totalorder %s104, %s105
    %p119 = scmp.eq.s32.totalorder %s15, 7
    %p120 = por %p118, %p119
    %p122 = scmp.ne.s32.totalorder %s105, %s121
    %p123 = scmp.eq.s32.totalorder %s15, 0
    %p124 = por %p122, %p123
    %p125 = scmp.le.s32.totalorder 1, %s9
    %p126 = scmp.lt.s32.totalorder %s9, 9
    %p127 = pnand %p125, %p126
    %p128 = pneg %p127
    // Predicated region
    $region9: #{tpu_custom_call.1} parent=5 // pred_check
      _
    $region10: #{tpu_custom_call.1} parent=5 // pred_check_branch
      %130 = sbr.rel (%p127) target = $region12
    $region11: #{tpu_custom_call.1} parent=5 // pred_region
      %s131 = ssub.s32 %s9, 1
      // Predicated region
      $region13: #{tpu_custom_call.1} parent=11 // pred_check
        %p132 = pneg %p68
      $region14: #{tpu_custom_call.1} parent=11 // pred_check_branch
        %134 = sbr.rel (%p132) target = $region16
      $region15: #{tpu_custom_call.1} parent=11 // pred_region
        _
      $region16: #{tpu_custom_call.1} parent=11 // pred_fallthru
        _
      // Predicated region
      $region17: #{tpu_custom_call.1} parent=11 // pred_check
        %p135 = pneg %p89
      $region18: #{tpu_custom_call.1} parent=11 // pred_check_branch
        %137 = sbr.rel (%p135) target = $region20
      $region19: #{tpu_custom_call.1} parent=11 // pred_region
        _
      $region20: #{tpu_custom_call.1} parent=11 // pred_fallthru
        _
    $region12: #{tpu_custom_call.1} parent=5 // pred_fallthru
      _
    %p138 = scmp.lt.s32.totalorder %s9, 8
    // Predicated region
    $region21: #{tpu_custom_call.1} parent=5 // pred_check
      %p139 = pneg %p138
    $region22: #{tpu_custom_call.1} parent=5 // pred_check_branch
      %141 = sbr.rel (%p139) target = $region24
    $region23: #{tpu_custom_call.1} parent=5 // pred_region
      // Predicated region
      $region25: #{tpu_custom_call.1} parent=23 // pred_check
        %p142 = pneg %p41
      $region26: #{tpu_custom_call.1} parent=23 // pred_check_branch
        %144 = sbr.rel (%p142) target = $region28
      $region27: #{tpu_custom_call.1} parent=23 // pred_region
        %p145 = scmp.lt.s32.totalorder %s16, 1
        %s146 = scalar_select %p145, %s16, 1
        %s147 = smul.addr %s146, 46
        %s148 = smul.addr %s147, 4
        %s149 = scalar_lea.vmem %s0, %s148
      $region28: #{tpu_custom_call.1} parent=23 // pred_fallthru
        _
    $region24: #{tpu_custom_call.1} parent=5 // pred_fallthru
      _
    %p150 = scmp.le.s32.totalorder 1, %s9
    %p151 = scmp.lt.s32.totalorder %s9, 9
    %p152 = pnand %p150, %p151
    %p153 = pneg %p152
    // Predicated region
    $region29: #{tpu_custom_call.1} parent=5 // pred_check
      _
    $region30: #{tpu_custom_call.1} parent=5 // pred_check_branch
      %155 = sbr.rel (%p152) target = $region32
    $region31: #{tpu_custom_call.1} parent=5 // pred_region
      %s156 = ssub.s32 %s9, 1
      %p157 = scmp.lt.s32.totalorder %s18, 1
      %s158 = scalar_select %p157, %s18, 1
      %s159 = smul.addr %s158, 46
      %s160 = smul.addr %s159, 4
      %s161 = scalar_lea.vmem %s0, %s160
      %p162 = pneg %p47
      %p163 = pneg %p44
      %p164 = pneg %p68
      %p165 = pneg %p65
      %p166 = pneg %p89
      %p167 = pneg %p86
      %p168 = pneg %p117
      %p169 = pneg %p114
      %s170 = smul.u32 10, %s19
      %p171 = scmp.lt.s32.totalorder %s18, 1
      %s172 = scalar_select %p171, %s18, 1
      %p173 = scmp.lt.s32.totalorder %s170, 39
      %s174 = scalar_select %p173, %s170, 39
      %s175 = smul.addr %s172, 40
      %s176 = sadd.s32 %s174, %s175
      %s177 = smul.addr %s176, 8
      %s178 = scalar_lea.vmem %s3, %s177
      %p179 = scmp.lt.s32.totalorder %s18, 1
      %s180 = scalar_select %p179, %s18, 1
      %s181 = smul.addr %s180, 46
      %s182 = smul.addr %s181, 4
      %s183 = scalar_lea.vmem %s0, %s182
      %s184 = smul.u32 10, %s19
      %p185 = scmp.lt.s32.totalorder %s18, 1
      %s186 = scalar_select %p185, %s18, 1
      %p187 = scmp.lt.s32.totalorder %s184, 39
      %s188 = scalar_select %p187, %s184, 39
      %s189 = smul.addr %s186, 40
      %s190 = sadd.s32 %s188, %s189
      %s191 = smul.addr %s190, 8
      %s192 = scalar_lea.vmem %s3, %s191
      %s193 = smul.u32 10, %s19
      %s195 = smul.u32 %s19, 80
      %s196 = sshra.s32 %s195, 3
      %s197 = sand.u32 %s195, 7
      %s198 = smul.addr %s196, 4
      %s199 = scalar_lea.vmem %s183, %s198
      %v200 = vld [vmem:[%s199] sm:$0xf]
      %v201 = vld [vmem:[%s199 + $0x4] sm:$0xf]
      %v202 = vld [vmem:[%s199 + $0x8] sm:$0xf]
      %v203 = vld [vmem:[%s199 + $0xc] sm:$0xf]
      %v204 = vld [vmem:[%s199 + $0x10] sm:$0xf]
      %v205 = vld [vmem:[%s199 + $0x14] sm:$0xf]
      %v206 = vld [vmem:[%s199 + $0x18] sm:$0xf]
      %v207 = vld [vmem:[%s199 + $0x1c] sm:$0xf]
      %v208 = vld [vmem:[%s199 + $0x20] sm:$0xf]
      %v209 = vld [vmem:[%s199 + $0x24] sm:$0xf]
      %v210 = vld [vmem:[%s1] sm:$0xf]
      %v221 = vunpack.c.l.b16 %v200
      %v222 = vunpack.c.l.b16 %v201
      %v223 = vunpack.c.l.b16 %v202
      %v224 = vunpack.c.l.b16 %v203
      %v225 = vunpack.c.l.b16 %v204
      %v226 = vunpack.c.l.b16 %v205
      %v227 = vunpack.c.l.b16 %v206
      %v228 = vunpack.c.l.b16 %v207
      %v229 = vunpack.c.l.b16 %v208
      %v230 = vunpack.c.l.b16 %v209
      %v231 = vpack.c.b16 %v222, %v221
      %v232 = vpack.c.b16 %v224, %v223
      %v233 = vpack.c.b16 %v226, %v225
      %v234 = vpack.c.b16 %v228, %v227
      %v235 = vpack.c.b16 %v230, %v229
      %vm236 = vcmask 64512
      %v238 = vsel %vm236, %v231, 0
      %v241 = vsel %vm236, %v232, 0
      %v244 = vsel %vm236, %v233, 0
      %v247 = vsel %vm236, %v234, 0
      %v250 = vsel %vm236, %v235, 0
      %vm252 = vcmask 1043456
      %v254 = vsel %vm252, %v210, 0
      %256 = vmatprep.subr.bf16.mxu0 0
      %257 = vmatpush1.bf16.msra.mxu0 0
      %258 = vmatprep.subr.bf16.mxu0 0
      %259 = vmatpush1.bf16.msra.mxu0 0
      %260 = vmatprep.subr.bf16.mxu0 0
      %261 = vmatpush1.bf16.msra.mxu0 0
      %262 = vmatprep.subr.bf16.mxu0 0
      %263 = vmatpush1.bf16.msra.mxu0 0
      %264 = vmatprep.subr.bf16.mxu0 0
      %265 = vmatpush1.bf16.msra.mxu0 0
      %266 = vmatprep.subr.bf16.mxu0 0
      %267 = vmatpush1.bf16.msra.mxu0 0
      %268 = vmatprep.subr.bf16.mxu0 0
      %269 = vmatpush1.bf16.msra.mxu0 0
      %270 = vmatprep.subr.bf16.mxu0 0
      %271 = vmatpush1.bf16.msra.mxu0 %v254
      %272 = vmatprep.subr.bf16.mxu0 0
      %273 = vmatpush2.bf16.msra.mxu0 0
      %274 = vmatprep.subr.bf16.mxu0 0
      %275 = vmatpush2.bf16.msra.mxu0 0
      %276 = vmatprep.subr.bf16.mxu0 0
      %277 = vmatpush2.bf16.msra.mxu0 0
      %278 = vmatprep.subr.bf16.mxu0 0
      %279 = vmatpush2.bf16.msra.mxu0 0
      %280 = vmatprep.subr.bf16.mxu0 0
      %281 = vmatpush2.bf16.msra.mxu0 0
      %282 = vmatprep.subr.bf16.mxu0 0
      %283 = vmatpush2.bf16.msra.mxu0 0
      %284 = vmatprep.subr.bf16.mxu0 0
      %285 = vmatpush2.bf16.msra.mxu0 0
      %286 = vmatprep.subr.bf16.mxu0 0
      %287 = vmatpush2.bf16.msra.mxu0 0
      %288 = vmatprep.mubr.bf16.mxu0 0
      %289 = vmatmul.mubr.bf16.gmra.mxu0 %v238
      %v290 = vpop.f32.mrf.mxu0
      %v291 = vadd.f32 0.0, %v290
      %v292 = vpop.f32.mrf.mxu0
      %v293 = vpop.f32.mrf.mxu0
      %v294 = vadd.f32 0.0, %v293
      %v295 = vpop.f32.mrf.mxu0
      %296 = vmatprep.mubr.bf16.mxu0 0
      %297 = vmatmul.mubr.bf16.gmra.mxu0 %v241
      %v298 = vpop.f32.mrf.mxu0
      %v299 = vadd.f32 0.0, %v298
      %v300 = vpop.f32.mrf.mxu0
      %v301 = vpop.f32.mrf.mxu0
      %v302 = vadd.f32 0.0, %v301
      %v303 = vpop.f32.mrf.mxu0
      %304 = vmatprep.mubr.bf16.mxu0 0
      %305 = vmatmul.mubr.bf16.gmra.mxu0 %v244
      %v306 = vpop.f32.mrf.mxu0
      %v307 = vadd.f32 0.0, %v306
      %v308 = vpop.f32.mrf.mxu0
      %v309 = vpop.f32.mrf.mxu0
      %v310 = vadd.f32 0.0, %v309
      %v311 = vpop.f32.mrf.mxu0
      %312 = vmatprep.mubr.bf16.mxu0 0
      %313 = vmatmul.mubr.bf16.gmra.mxu0 %v247
      %v314 = vpop.f32.mrf.mxu0
      %v315 = vadd.f32 0.0, %v314
      %v316 = vpop.f32.mrf.mxu0
      %v317 = vpop.f32.mrf.mxu0
      %v318 = vadd.f32 0.0, %v317
      %v319 = vpop.f32.mrf.mxu0
      %320 = vmatprep.mubr.bf16.mxu0 0
      %321 = vmatmul.mubr.bf16.gmra.mxu0 %v250
      %v322 = vpop.f32.mrf.mxu0
      %v323 = vadd.f32 0.0, %v322
      %v324 = vpop.f32.mrf.mxu0
      %v325 = vpop.f32.mrf.mxu0
      %v326 = vadd.f32 0.0, %v325
      %v327 = vpop.f32.mrf.mxu0
      %328 = vdwg.mxu0
      %329 = vst.msk [vmem:[%s192] sm:$0xff] %vm236, %v291
      %330 = vst.msk [vmem:[%s192 + $0x8] sm:$0xff] %vm236, %v294
      %331 = vst.msk [vmem:[%s192 + $0x10] sm:$0xff] %vm236, %v299
      %332 = vst.msk [vmem:[%s192 + $0x18] sm:$0xff] %vm236, %v302
      %333 = vst.msk [vmem:[%s192 + $0x20] sm:$0xff] %vm236, %v307
      %334 = vst.msk [vmem:[%s192 + $0x28] sm:$0xff] %vm236, %v310
      %335 = vst.msk [vmem:[%s192 + $0x30] sm:$0xff] %vm236, %v315
      %336 = vst.msk [vmem:[%s192 + $0x38] sm:$0xff] %vm236, %v318
      %337 = vst.msk [vmem:[%s192 + $0x40] sm:$0xff] %vm236, %v323
      %338 = vst.msk [vmem:[%s192 + $0x48] sm:$0xff] %vm236, %v326
      %v339 = vld [vmem:[%s199] sm:$0xf]
      %v340 = vld [vmem:[%s199 + $0x4] sm:$0xf]
      %v341 = vld [vmem:[%s199 + $0x8] sm:$0xf]
      %v342 = vld [vmem:[%s199 + $0xc] sm:$0xf]
      %v343 = vld [vmem:[%s199 + $0x10] sm:$0xf]
      %v344 = vld [vmem:[%s199 + $0x14] sm:$0xf]
      %v345 = vld [vmem:[%s199 + $0x18] sm:$0xf]
      %v346 = vld [vmem:[%s199 + $0x1c] sm:$0xf]
      %v347 = vld [vmem:[%s199 + $0x20] sm:$0xf]
      %v348 = vld [vmem:[%s199 + $0x24] sm:$0xf]
      %v349 = vld [vmem:[%s199 + $0x28] sm:$0xf]
      %s350 = scalar_lea.vmem %s1, 4
      %v351 = vld [vmem:[%s350] sm:$0xf]
      %v363 = vunpack.c.l.b16 %v339
      %v364 = vunpack.c.l.b16 %v340
      %v365 = vunpack.c.l.b16 %v341
      %v366 = vunpack.c.l.b16 %v342
      %v367 = vunpack.c.l.b16 %v343
      %v368 = vunpack.c.l.b16 %v344
      %v369 = vunpack.c.l.b16 %v345
      %v370 = vunpack.c.l.b16 %v346
      %v371 = vunpack.c.l.b16 %v347
      %v372 = vunpack.c.l.b16 %v348
      %v373 = vunpack.c.l.b16 %v349
      %v374 = vpack.c.b16 %v364, %v363
      %v375 = vpack.c.b16 %v366, %v365
      %v376 = vpack.c.b16 %v368, %v367
      %v377 = vpack.c.b16 %v370, %v369
      %v378 = vpack.c.b16 %v372, %v371
      %v379 = vpack.c.b16 %v373, %v373
      %vm380 = vsmask.f32 7424
      %v382 = vshrl.u32 %v374, 16
      %v384 = vshll.u32 %v374, 16
      %v386 = vrot.slane %v384, 1
      %v387 = vor.u32 %v382, %v386
      %v389 = vshll.u32 %v375, 16
      %v391 = vrot.slane %v389, 1
      %v392 = vsel %vm380, %v387, %v391
      %v393 = vshrl.u32 %v375, 16
      %v395 = vor.u32 %v393, %v391
      %v397 = vshll.u32 %v376, 16
      %v399 = vrot.slane %v397, 1
      %v400 = vsel %vm380, %v395, %v399
      %v401 = vshrl.u32 %v376, 16
      %v403 = vor.u32 %v401, %v399
      %v405 = vshll.u32 %v377, 16
      %v407 = vrot.slane %v405, 1
      %v408 = vsel %vm380, %v403, %v407
      %v409 = vshrl.u32 %v377, 16
      %v411 = vor.u32 %v409, %v407
      %v413 = vshll.u32 %v378, 16
      %v415 = vrot.slane %v413, 1
      %v416 = vsel %vm380, %v411, %v415
      %v417 = vshrl.u32 %v378, 16
      %v419 = vor.u32 %v417, %v415
      %v421 = vshll.u32 %v379, 16
      %v423 = vrot.slane %v421, 1
      %v424 = vsel %vm380, %v419, %v423
      %v426 = vsel %vm236, %v392, 0
      %v429 = vsel %vm236, %v400, 0
      %v432 = vsel %vm236, %v408, 0
      %v435 = vsel %vm236, %v416, 0
      %v438 = vsel %vm236, %v424, 0
      %v441 = vsel %vm252, %v351, 0
      %443 = vmatprep.subr.bf16.mxu0 0
      %444 = vmatpush1.bf16.msra.mxu0 0
      %445 = vmatprep.subr.bf16.mxu0 0
      %446 = vmatpush1.bf16.msra.mxu0 0
      %447 = vmatprep.subr.bf16.mxu0 0
      %448 = vmatpush1.bf16.msra.mxu0 0
      %449 = vmatprep.subr.bf16.mxu0 0
      %450 = vmatpush1.bf16.msra.mxu0 0
      %451 = vmatprep.subr.bf16.mxu0 0
      %452 = vmatpush1.bf16.msra.mxu0 0
      %453 = vmatprep.subr.bf16.mxu0 0
      %454 = vmatpush1.bf16.msra.mxu0 0
      %455 = vmatprep.subr.bf16.mxu0 0
      %456 = vmatpush1.bf16.msra.mxu0 0
      %457 = vmatprep.subr.bf16.mxu0 0
      %458 = vmatpush1.bf16.msra.mxu0 %v441
      %459 = vmatprep.subr.bf16.mxu0 0
      %460 = vmatpush2.bf16.msra.mxu0 0
      %461 = vmatprep.subr.bf16.mxu0 0
      %462 = vmatpush2.bf16.msra.mxu0 0
      %463 = vmatprep.subr.bf16.mxu0 0
      %464 = vmatpush2.bf16.msra.mxu0 0
      %465 = vmatprep.subr.bf16.mxu0 0
      %466 = vmatpush2.bf16.msra.mxu0 0
      %467 = vmatprep.subr.bf16.mxu0 0
      %468 = vmatpush2.bf16.msra.mxu0 0
      %469 = vmatprep.subr.bf16.mxu0 0
      %470 = vmatpush2.bf16.msra.mxu0 0
      %471 = vmatprep.subr.bf16.mxu0 0
      %472 = vmatpush2.bf16.msra.mxu0 0
      %473 = vmatprep.subr.bf16.mxu0 0
      %474 = vmatpush2.bf16.msra.mxu0 0
      %475 = vmatprep.mubr.bf16.mxu0 0
      %476 = vmatmul.mubr.bf16.gmra.mxu0 %v426
      %v477 = vpop.f32.mrf.mxu0
      %v478 = vadd.f32 0.0, %v477
      %v479 = vpop.f32.mrf.mxu0
      %v480 = vpop.f32.mrf.mxu0
      %v481 = vadd.f32 0.0, %v480
      %v482 = vpop.f32.mrf.mxu0
      %483 = vmatprep.mubr.bf16.mxu0 0
      %484 = vmatmul.mubr.bf16.gmra.mxu0 %v429
      %v485 = vpop.f32.mrf.mxu0
      %v486 = vadd.f32 0.0, %v485
      %v487 = vpop.f32.mrf.mxu0
      %v488 = vpop.f32.mrf.mxu0
      %v489 = vadd.f32 0.0, %v488
      %v490 = vpop.f32.mrf.mxu0
      %491 = vmatprep.mubr.bf16.mxu0 0
      %492 = vmatmul.mubr.bf16.gmra.mxu0 %v432
      %v493 = vpop.f32.mrf.mxu0
      %v494 = vadd.f32 0.0, %v493
      %v495 = vpop.f32.mrf.mxu0
      %v496 = vpop.f32.mrf.mxu0
      %v497 = vadd.f32 0.0, %v496
      %v498 = vpop.f32.mrf.mxu0
      %499 = vmatprep.mubr.bf16.mxu0 0
      %500 = vmatmul.mubr.bf16.gmra.mxu0 %v435
      %v501 = vpop.f32.mrf.mxu0
      %v502 = vadd.f32 0.0, %v501
      %v503 = vpop.f32.mrf.mxu0
      %v504 = vpop.f32.mrf.mxu0
      %v505 = vadd.f32 0.0, %v504
      %v506 = vpop.f32.mrf.mxu0
      %507 = vmatprep.mubr.bf16.mxu0 0
      %508 = vmatmul.mubr.bf16.gmra.mxu0 %v438
      %v509 = vpop.f32.mrf.mxu0
      %v510 = vadd.f32 0.0, %v509
      %v511 = vpop.f32.mrf.mxu0
      %v512 = vpop.f32.mrf.mxu0
      %v513 = vadd.f32 0.0, %v512
      %v514 = vpop.f32.mrf.mxu0
      %515 = vdwg.mxu0
      %v516 = vld [vmem:[%s192] sm:$0xff]
      %v517 = vld [vmem:[%s192 + $0x8] sm:$0xff]
      %v518 = vld [vmem:[%s192 + $0x10] sm:$0xff]
      %v519 = vld [vmem:[%s192 + $0x18] sm:$0xff]
      %v520 = vld [vmem:[%s192 + $0x20] sm:$0xff]
      %v521 = vld [vmem:[%s192 + $0x28] sm:$0xff]
      %v522 = vld [vmem:[%s192 + $0x30] sm:$0xff]
      %v523 = vld [vmem:[%s192 + $0x38] sm:$0xff]
      %v524 = vld [vmem:[%s192 + $0x40] sm:$0xff]
      %v525 = vld [vmem:[%s192 + $0x48] sm:$0xff]
      %v526 = vadd.f32 %v516, %v478
      %v527 = vadd.f32 %v517, %v481
      %v528 = vadd.f32 %v518, %v486
      %v529 = vadd.f32 %v519, %v489
      %v530 = vadd.f32 %v520, %v494
      %v531 = vadd.f32 %v521, %v497
      %v532 = vadd.f32 %v522, %v502
      %v533 = vadd.f32 %v523, %v505
      %v534 = vadd.f32 %v524, %v510
      %v535 = vadd.f32 %v525, %v513
      %536 = vst.msk [vmem:[%s192] sm:$0xff] %vm236, %v526
      %537 = vst.msk [vmem:[%s192 + $0x8] sm:$0xff] %vm236, %v527
      %538 = vst.msk [vmem:[%s192 + $0x10] sm:$0xff] %vm236, %v528
      %539 = vst.msk [vmem:[%s192 + $0x18] sm:$0xff] %vm236, %v529
      %540 = vst.msk [vmem:[%s192 + $0x20] sm:$0xff] %vm236, %v530
      %541 = vst.msk [vmem:[%s192 + $0x28] sm:$0xff] %vm236, %v531
      %542 = vst.msk [vmem:[%s192 + $0x30] sm:$0xff] %vm236, %v532
      %543 = vst.msk [vmem:[%s192 + $0x38] sm:$0xff] %vm236, %v533
      %544 = vst.msk [vmem:[%s192 + $0x40] sm:$0xff] %vm236, %v534
      %545 = vst.msk [vmem:[%s192 + $0x48] sm:$0xff] %vm236, %v535
      %v546 = vld [vmem:[%s199] sm:$0xf]
      %v547 = vld [vmem:[%s199 + $0x4] sm:$0xf]
      %v548 = vld [vmem:[%s199 + $0x8] sm:$0xf]
      %v549 = vld [vmem:[%s199 + $0xc] sm:$0xf]
      %v550 = vld [vmem:[%s199 + $0x10] sm:$0xf]
      %v551 = vld [vmem:[%s199 + $0x14] sm:$0xf]
      %v552 = vld [vmem:[%s199 + $0x18] sm:$0xf]
      %v553 = vld [vmem:[%s199 + $0x1c] sm:$0xf]
      %v554 = vld [vmem:[%s199 + $0x20] sm:$0xf]
      %v555 = vld [vmem:[%s199 + $0x24] sm:$0xf]
      %v556 = vld [vmem:[%s199 + $0x28] sm:$0xf]
      %s557 = scalar_lea.vmem %s1, 8
      %v558 = vld [vmem:[%s557] sm:$0xf]
      %v570 = vunpack.c.l.b16 %v546
      %v571 = vunpack.c.l.b16 %v547
      %v572 = vunpack.c.l.b16 %v548
      %v573 = vunpack.c.l.b16 %v549
      %v574 = vunpack.c.l.b16 %v550
      %v575 = vunpack.c.l.b16 %v551
      %v576 = vunpack.c.l.b16 %v552
      %v577 = vunpack.c.l.b16 %v553
      %v578 = vunpack.c.l.b16 %v554
      %v579 = vunpack.c.l.b16 %v555
      %v580 = vunpack.c.l.b16 %v556
      %v581 = vpack.c.b16 %v571, %v570
      %v582 = vpack.c.b16 %v573, %v572
      %v583 = vpack.c.b16 %v575, %v574
      %v584 = vpack.c.b16 %v577, %v576
      %v585 = vpack.c.b16 %v579, %v578
      %v586 = vpack.c.b16 %v580, %v580
      %vm587 = vcmask 1046528
      %v588 = vrot.slane %v581, 1
      %v589 = vrot.slane %v582, 1
      %v590 = vsel %vm587, %v588, %v589
      %v591 = vrot.slane %v583, 1
      %v592 = vsel %vm587, %v589, %v591
      %v593 = vrot.slane %v584, 1
      %v594 = vsel %vm587, %v591, %v593
      %v595 = vrot.slane %v585, 1
      %v596 = vsel %vm587, %v593, %v595
      %v597 = vrot.slane %v586, 1
      %v598 = vsel %vm587, %v595, %v597
      %v600 = vsel %vm236, %v590, 0
      %v603 = vsel %vm236, %v592, 0
      %v606 = vsel %vm236, %v594, 0
      %v609 = vsel %vm236, %v596, 0
      %v612 = vsel %vm236, %v598, 0
      %v615 = vsel %vm252, %v558, 0
      %617 = vmatprep.subr.bf16.mxu0 0
      %618 = vmatpush1.bf16.msra.mxu0 0
      %619 = vmatprep.subr.bf16.mxu0 0
      %620 = vmatpush1.bf16.msra.mxu0 0
      %621 = vmatprep.subr.bf16.mxu0 0
      %622 = vmatpush1.bf16.msra.mxu0 0
      %623 = vmatprep.subr.bf16.mxu0 0
      %624 = vmatpush1.bf16.msra.mxu0 0
      %625 = vmatprep.subr.bf16.mxu0 0
      %626 = vmatpush1.bf16.msra.mxu0 0
      %627 = vmatprep.subr.bf16.mxu0 0
      %628 = vmatpush1.bf16.msra.mxu0 0
      %629 = vmatprep.subr.bf16.mxu0 0
      %630 = vmatpush1.bf16.msra.mxu0 0
      %631 = vmatprep.subr.bf16.mxu0 0
      %632 = vmatpush1.bf16.msra.mxu0 %v615
      %633 = vmatprep.subr.bf16.mxu0 0
      %634 = vmatpush2.bf16.msra.mxu0 0
      %635 = vmatprep.subr.bf16.mxu0 0
      %636 = vmatpush2.bf16.msra.mxu0 0
      %637 = vmatprep.subr.bf16.mxu0 0
      %638 = vmatpush2.bf16.msra.mxu0 0
      %639 = vmatprep.subr.bf16.mxu0 0
      %640 = vmatpush2.bf16.msra.mxu0 0
      %641 = vmatprep.subr.bf16.mxu0 0
      %642 = vmatpush2.bf16.msra.mxu0 0
      %643 = vmatprep.subr.bf16.mxu0 0
      %644 = vmatpush2.bf16.msra.mxu0 0
      %645 = vmatprep.subr.bf16.mxu0 0
      %646 = vmatpush2.bf16.msra.mxu0 0
      %647 = vmatprep.subr.bf16.mxu0 0
      %648 = vmatpush2.bf16.msra.mxu0 0
      %649 = vmatprep.mubr.bf16.mxu0 0
      %650 = vmatmul.mubr.bf16.gmra.mxu0 %v600
      %v651 = vpop.f32.mrf.mxu0
      %v652 = vadd.f32 0.0, %v651
      %v653 = vpop.f32.mrf.mxu0
      %v654 = vpop.f32.mrf.mxu0
      %v655 = vadd.f32 0.0, %v654
      %v656 = vpop.f32.mrf.mxu0
      %657 = vmatprep.mubr.bf16.mxu0 0
      %658 = vmatmul.mubr.bf16.gmra.mxu0 %v603
      %v659 = vpop.f32.mrf.mxu0
      %v660 = vadd.f32 0.0, %v659
      %v661 = vpop.f32.mrf.mxu0
      %v662 = vpop.f32.mrf.mxu0
      %v663 = vadd.f32 0.0, %v662
      %v664 = vpop.f32.mrf.mxu0
      %665 = vmatprep.mubr.bf16.mxu0 0
      %666 = vmatmul.mubr.bf16.gmra.mxu0 %v606
      %v667 = vpop.f32.mrf.mxu0
      %v668 = vadd.f32 0.0, %v667
      %v669 = vpop.f32.mrf.mxu0
      %v670 = vpop.f32.mrf.mxu0
      %v671 = vadd.f32 0.0, %v670
      %v672 = vpop.f32.mrf.mxu0
      %673 = vmatprep.mubr.bf16.mxu0 0
      %674 = vmatmul.mubr.bf16.gmra.mxu0 %v609
      %v675 = vpop.f32.mrf.mxu0
      %v676 = vadd.f32 0.0, %v675
      %v677 = vpop.f32.mrf.mxu0
      %v678 = vpop.f32.mrf.mxu0
      %v679 = vadd.f32 0.0, %v678
      %v680 = vpop.f32.mrf.mxu0
      %681 = vmatprep.mubr.bf16.mxu0 0
      %682 = vmatmul.mubr.bf16.gmra.mxu0 %v612
      %v683 = vpop.f32.mrf.mxu0
      %v684 = vadd.f32 0.0, %v683
      %v685 = vpop.f32.mrf.mxu0
      %v686 = vpop.f32.mrf.mxu0
      %v687 = vadd.f32 0.0, %v686
      %v688 = vpop.f32.mrf.mxu0
      %689 = vdwg.mxu0
      %v690 = vld [vmem:[%s192] sm:$0xff]
      %v691 = vld [vmem:[%s192 + $0x8] sm:$0xff]
      %v692 = vld [vmem:[%s192 + $0x10] sm:$0xff]
      %v693 = vld [vmem:[%s192 + $0x18] sm:$0xff]
      %v694 = vld [vmem:[%s192 + $0x20] sm:$0xff]
      %v695 = vld [vmem:[%s192 + $0x28] sm:$0xff]
      %v696 = vld [vmem:[%s192 + $0x30] sm:$0xff]
      %v697 = vld [vmem:[%s192 + $0x38] sm:$0xff]
      %v698 = vld [vmem:[%s192 + $0x40] sm:$0xff]
      %v699 = vld [vmem:[%s192 + $0x48] sm:$0xff]
      %v700 = vadd.f32 %v690, %v652
      %v701 = vadd.f32 %v691, %v655
      %v702 = vadd.f32 %v692, %v660
      %v703 = vadd.f32 %v693, %v663
      %v704 = vadd.f32 %v694, %v668
      %v705 = vadd.f32 %v695, %v671
      %v706 = vadd.f32 %v696, %v676
      %v707 = vadd.f32 %v697, %v679
      %v708 = vadd.f32 %v698, %v684
      %v709 = vadd.f32 %v699, %v687
      %710 = vst.msk [vmem:[%s192] sm:$0xff] %vm236, %v700
      %711 = vst.msk [vmem:[%s192 + $0x8] sm:$0xff] %vm236, %v701
      %712 = vst.msk [vmem:[%s192 + $0x10] sm:$0xff] %vm236, %v702
      %713 = vst.msk [vmem:[%s192 + $0x18] sm:$0xff] %vm236, %v703
      %714 = vst.msk [vmem:[%s192 + $0x20] sm:$0xff] %vm236, %v704
      %715 = vst.msk [vmem:[%s192 + $0x28] sm:$0xff] %vm236, %v705
      %716 = vst.msk [vmem:[%s192 + $0x30] sm:$0xff] %vm236, %v706
      %717 = vst.msk [vmem:[%s192 + $0x38] sm:$0xff] %vm236, %v707
      %718 = vst.msk [vmem:[%s192 + $0x40] sm:$0xff] %vm236, %v708
      %719 = vst.msk [vmem:[%s192 + $0x48] sm:$0xff] %vm236, %v709
      %s720 = sadd.s32 %s195, 16
      %s721 = sshra.s32 %s720, 3
      %s722 = sand.u32 %s720, 7
      %s723 = smul.addr %s721, 4
      %s724 = scalar_lea.vmem %s183, %s723
      %v725 = vld [vmem:[%s724] sm:$0xf]
      %v726 = vld [vmem:[%s724 + $0x4] sm:$0xf]
      %v727 = vld [vmem:[%s724 + $0x8] sm:$0xf]
      %v728 = vld [vmem:[%s724 + $0xc] sm:$0xf]
      %v729 = vld [vmem:[%s724 + $0x10] sm:$0xf]
      %v730 = vld [vmem:[%s724 + $0x14] sm:$0xf]
      %v731 = vld [vmem:[%s724 + $0x18] sm:$0xf]
      %v732 = vld [vmem:[%s724 + $0x1c] sm:$0xf]
      %v733 = vld [vmem:[%s724 + $0x20] sm:$0xf]
      %v734 = vld [vmem:[%s724 + $0x24] sm:$0xf]
      %v735 = vld [vmem:[%s724 + $0x28] sm:$0xf]
      %s736 = scalar_lea.vmem %s1, 12
      %v737 = vld [vmem:[%s736] sm:$0xf]
      %v749 = vunpack.c.l.b16 %v725
      %v750 = vunpack.c.l.b16 %v726
      %v751 = vunpack.c.l.b16 %v727
      %v752 = vunpack.c.l.b16 %v728
      %v753 = vunpack.c.l.b16 %v729
      %v754 = vunpack.c.l.b16 %v730
      %v755 = vunpack.c.l.b16 %v731
      %v756 = vunpack.c.l.b16 %v732
      %v757 = vunpack.c.l.b16 %v733
      %v758 = vunpack.c.l.b16 %v734
      %v759 = vunpack.c.l.b16 %v735
      %v760 = vpack.c.b16 %v750, %v749
      %v761 = vpack.c.b16 %v752, %v751
      %v762 = vpack.c.b16 %v754, %v753
      %v763 = vpack.c.b16 %v756, %v755
      %v764 = vpack.c.b16 %v758, %v757
      %v765 = vpack.c.b16 %v759, %v759
      %v766 = vrot.slane %v760, 1
      %v767 = vrot.slane %v761, 1
      %v768 = vsel %vm587, %v766, %v767
      %v769 = vrot.slane %v762, 1
      %v770 = vsel %vm587, %v767, %v769
      %v771 = vrot.slane %v763, 1
      %v772 = vsel %vm587, %v769, %v771
      %v773 = vrot.slane %v764, 1
      %v774 = vsel %vm587, %v771, %v773
      %v775 = vrot.slane %v765, 1
      %v776 = vsel %vm587, %v773, %v775
      %v778 = vsel %vm236, %v768, 0
      %v781 = vsel %vm236, %v770, 0
      %v784 = vsel %vm236, %v772, 0
      %v787 = vsel %vm236, %v774, 0
      %v790 = vsel %vm236, %v776, 0
      %v793 = vsel %vm252, %v737, 0
      %795 = vmatprep.subr.bf16.mxu0 0
      %796 = vmatpush1.bf16.msra.mxu0 0
      %797 = vmatprep.subr.bf16.mxu0 0
      %798 = vmatpush1.bf16.msra.mxu0 0
      %799 = vmatprep.subr.bf16.mxu0 0
      %800 = vmatpush1.bf16.msra.mxu0 0
      %801 = vmatprep.subr.bf16.mxu0 0
      %802 = vmatpush1.bf16.msra.mxu0 0
      %803 = vmatprep.subr.bf16.mxu0 0
      %804 = vmatpush1.bf16.msra.mxu0 0
      %805 = vmatprep.subr.bf16.mxu0 0
      %806 = vmatpush1.bf16.msra.mxu0 0
      %807 = vmatprep.subr.bf16.mxu0 0
      %808 = vmatpush1.bf16.msra.mxu0 0
      %809 = vmatprep.subr.bf16.mxu0 0
      %810 = vmatpush1.bf16.msra.mxu0 %v793
      %811 = vmatprep.subr.bf16.mxu0 0
      %812 = vmatpush2.bf16.msra.mxu0 0
      %813 = vmatprep.subr.bf16.mxu0 0
      %814 = vmatpush2.bf16.msra.mxu0 0
      %815 = vmatprep.subr.bf16.mxu0 0
      %816 = vmatpush2.bf16.msra.mxu0 0
      %817 = vmatprep.subr.bf16.mxu0 0
      %818 = vmatpush2.bf16.msra.mxu0 0
      %819 = vmatprep.subr.bf16.mxu0 0
      %820 = vmatpush2.bf16.msra.mxu0 0
      %821 = vmatprep.subr.bf16.mxu0 0
      %822 = vmatpush2.bf16.msra.mxu0 0
      %823 = vmatprep.subr.bf16.mxu0 0
      %824 = vmatpush2.bf16.msra.mxu0 0
      %825 = vmatprep.subr.bf16.mxu0 0
      %826 = vmatpush2.bf16.msra.mxu0 0
      %827 = vmatprep.mubr.bf16.mxu0 0
      %828 = vmatmul.mubr.bf16.gmra.mxu0 %v778
      %v829 = vpop.f32.mrf.mxu0
      %v830 = vadd.f32 0.0, %v829
      %v831 = vpop.f32.mrf.mxu0
      %v832 = vpop.f32.mrf.mxu0
      %v833 = vadd.f32 0.0, %v832
      %v834 = vpop.f32.mrf.mxu0
      %835 = vmatprep.mubr.bf16.mxu0 0
      %836 = vmatmul.mubr.bf16.gmra.mxu0 %v781
      %v837 = vpop.f32.mrf.mxu0
      %v838 = vadd.f32 0.0, %v837
      %v839 = vpop.f32.mrf.mxu0
      %v840 = vpop.f32.mrf.mxu0
      %v841 = vadd.f32 0.0, %v840
      %v842 = vpop.f32.mrf.mxu0
      %843 = vmatprep.mubr.bf16.mxu0 0
      %844 = vmatmul.mubr.bf16.gmra.mxu0 %v784
      %v845 = vpop.f32.mrf.mxu0
      %v846 = vadd.f32 0.0, %v845
      %v847 = vpop.f32.mrf.mxu0
      %v848 = vpop.f32.mrf.mxu0
      %v849 = vadd.f32 0.0, %v848
      %v850 = vpop.f32.mrf.mxu0
      %851 = vmatprep.mubr.bf16.mxu0 0
      %852 = vmatmul.mubr.bf16.gmra.mxu0 %v787
      %v853 = vpop.f32.mrf.mxu0
      %v854 = vadd.f32 0.0, %v853
      %v855 = vpop.f32.mrf.mxu0
      %v856 = vpop.f32.mrf.mxu0
      %v857 = vadd.f32 0.0, %v856
      %v858 = vpop.f32.mrf.mxu0
      %859 = vmatprep.mubr.bf16.mxu0 0
      %860 = vmatmul.mubr.bf16.gmra.mxu0 %v790
      %v861 = vpop.f32.mrf.mxu0
      %v862 = vadd.f32 0.0, %v861
      %v863 = vpop.f32.mrf.mxu0
      %v864 = vpop.f32.mrf.mxu0
      %v865 = vadd.f32 0.0, %v864
      %v866 = vpop.f32.mrf.mxu0
      %867 = vdwg.mxu0
      %v868 = vld [vmem:[%s192] sm:$0xff]
      %v869 = vld [vmem:[%s192 + $0x8] sm:$0xff]
      %v870 = vld [vmem:[%s192 + $0x10] sm:$0xff]
      %v871 = vld [vmem:[%s192 + $0x18] sm:$0xff]
      %v872 = vld [vmem:[%s192 + $0x20] sm:$0xff]
      %v873 = vld [vmem:[%s192 + $0x28] sm:$0xff]
      %v874 = vld [vmem:[%s192 + $0x30] sm:$0xff]
      %v875 = vld [vmem:[%s192 + $0x38] sm:$0xff]
      %v876 = vld [vmem:[%s192 + $0x40] sm:$0xff]
      %v877 = vld [vmem:[%s192 + $0x48] sm:$0xff]
      %v878 = vadd.f32 %v868, %v830
      %v879 = vadd.f32 %v869, %v833
      %v880 = vadd.f32 %v870, %v838
      %v881 = vadd.f32 %v871, %v841
      %v882 = vadd.f32 %v872, %v846
      %v883 = vadd.f32 %v873, %v849
      %v884 = vadd.f32 %v874, %v854
      %v885 = vadd.f32 %v875, %v857
      %v886 = vadd.f32 %v876, %v862
      %v887 = vadd.f32 %v877, %v865
      %888 = vst.msk [vmem:[%s192] sm:$0xff] %vm236, %v878
      %889 = vst.msk [vmem:[%s192 + $0x8] sm:$0xff] %vm236, %v879
      %890 = vst.msk [vmem:[%s192 + $0x10] sm:$0xff] %vm236, %v880
      %891 = vst.msk [vmem:[%s192 + $0x18] sm:$0xff] %vm236, %v881
      %892 = vst.msk [vmem:[%s192 + $0x20] sm:$0xff] %vm236, %v882
      %893 = vst.msk [vmem:[%s192 + $0x28] sm:$0xff] %vm236, %v883
      %894 = vst.msk [vmem:[%s192 + $0x30] sm:$0xff] %vm236, %v884
      %895 = vst.msk [vmem:[%s192 + $0x38] sm:$0xff] %vm236, %v885
      %896 = vst.msk [vmem:[%s192 + $0x40] sm:$0xff] %vm236, %v886
      %897 = vst.msk [vmem:[%s192 + $0x48] sm:$0xff] %vm236, %v887
      %v898 = vld [vmem:[%s724] sm:$0xf]
      %v899 = vld [vmem:[%s724 + $0x4] sm:$0xf]
      %v900 = vld [vmem:[%s724 + $0x8] sm:$0xf]
      %v901 = vld [vmem:[%s724 + $0xc] sm:$0xf]
      %v902 = vld [vmem:[%s724 + $0x10] sm:$0xf]
      %v903 = vld [vmem:[%s724 + $0x14] sm:$0xf]
      %v904 = vld [vmem:[%s724 + $0x18] sm:$0xf]
      %v905 = vld [vmem:[%s724 + $0x1c] sm:$0xf]
      %v906 = vld [vmem:[%s724 + $0x20] sm:$0xf]
      %v907 = vld [vmem:[%s724 + $0x24] sm:$0xf]
      %v908 = vld [vmem:[%s724 + $0x28] sm:$0xf]
      %s909 = scalar_lea.vmem %s1, 16
      %v910 = vld [vmem:[%s909] sm:$0xf]
      %v922 = vunpack.c.l.b16 %v898
      %v923 = vunpack.c.l.b16 %v899
      %v924 = vunpack.c.l.b16 %v900
      %v925 = vunpack.c.l.b16 %v901
      %v926 = vunpack.c.l.b16 %v902
      %v927 = vunpack.c.l.b16 %v903
      %v928 = vunpack.c.l.b16 %v904
      %v929 = vunpack.c.l.b16 %v905
      %v930 = vunpack.c.l.b16 %v906
      %v931 = vunpack.c.l.b16 %v907
      %v932 = vunpack.c.l.b16 %v908
      %v933 = vpack.c.b16 %v923, %v922
      %v934 = vpack.c.b16 %v925, %v924
      %v935 = vpack.c.b16 %v927, %v926
      %v936 = vpack.c.b16 %v929, %v928
      %v937 = vpack.c.b16 %v931, %v930
      %v938 = vpack.c.b16 %v932, %v932
      %vm939 = vsmask.f32 6400
      %v941 = vshrl.u32 %v933, 16
      %v943 = vrot.slane %v941, 1
      %v944 = vshll.u32 %v933, 16
      %v946 = vrot.slane %v944, 2
      %v947 = vor.u32 %v943, %v946
      %v949 = vshrl.u32 %v934, 16
      %v951 = vrot.slane %v949, 1
      %v952 = vshll.u32 %v934, 16
      %v954 = vrot.slane %v952, 2
      %v955 = vor.u32 %v951, %v954
      %v956 = vsel %vm939, %v947, %v955
      %v958 = vshrl.u32 %v935, 16
      %v960 = vrot.slane %v958, 1
      %v961 = vshll.u32 %v935, 16
      %v963 = vrot.slane %v961, 2
      %v964 = vor.u32 %v960, %v963
      %v965 = vsel %vm939, %v955, %v964
      %v967 = vshrl.u32 %v936, 16
      %v969 = vrot.slane %v967, 1
      %v970 = vshll.u32 %v936, 16
      %v972 = vrot.slane %v970, 2
      %v973 = vor.u32 %v969, %v972
      %v974 = vsel %vm939, %v964, %v973
      %v976 = vshrl.u32 %v937, 16
      %v978 = vrot.slane %v976, 1
      %v979 = vshll.u32 %v937, 16
      %v981 = vrot.slane %v979, 2
      %v982 = vor.u32 %v978, %v981
      %v983 = vsel %vm939, %v973, %v982
      %v985 = vshrl.u32 %v938, 16
      %v987 = vrot.slane %v985, 1
      %v988 = vshll.u32 %v938, 16
      %v990 = vrot.slane %v988, 2
      %v991 = vor.u32 %v987, %v990
      %v992 = vsel %vm939, %v982, %v991
      %v994 = vsel %vm236, %v956, 0
      %v997 = vsel %vm236, %v965, 0
      %v1000 = vsel %vm236, %v974, 0
      %v1003 = vsel %vm236, %v983, 0
      %v1006 = vsel %vm236, %v992, 0
      %v1009 = vsel %vm252, %v910, 0
      %1011 = vmatprep.subr.bf16.mxu0 0
      %1012 = vmatpush1.bf16.msra.mxu0 0
      %1013 = vmatprep.subr.bf16.mxu0 0
      %1014 = vmatpush1.bf16.msra.mxu0 0
      %1015 = vmatprep.subr.bf16.mxu0 0
      %1016 = vmatpush1.bf16.msra.mxu0 0
      %1017 = vmatprep.subr.bf16.mxu0 0
      %1018 = vmatpush1.bf16.msra.mxu0 0
      %1019 = vmatprep.subr.bf16.mxu0 0
      %1020 = vmatpush1.bf16.msra.mxu0 0
      %1021 = vmatprep.subr.bf16.mxu0 0
      %1022 = vmatpush1.bf16.msra.mxu0 0
      %1023 = vmatprep.subr.bf16.mxu0 0
      %1024 = vmatpush1.bf16.msra.mxu0 0
      %1025 = vmatprep.subr.bf16.mxu0 0
      %1026 = vmatpush1.bf16.msra.mxu0 %v1009
      %1027 = vmatprep.subr.bf16.mxu0 0
      %1028 = vmatpush2.bf16.msra.mxu0 0
      %1029 = vmatprep.subr.bf16.mxu0 0
      %1030 = vmatpush2.bf16.msra.mxu0 0
      %1031 = vmatprep.subr.bf16.mxu0 0
      %1032 = vmatpush2.bf16.msra.mxu0 0
      %1033 = vmatprep.subr.bf16.mxu0 0
      %1034 = vmatpush2.bf16.msra.mxu0 0
      %1035 = vmatprep.subr.bf16.mxu0 0
      %1036 = vmatpush2.bf16.msra.mxu0 0
      %1037 = vmatprep.subr.bf16.mxu0 0
      %1038 = vmatpush2.bf16.msra.mxu0 0
      %1039 = vmatprep.subr.bf16.mxu0 0
      %1040 = vmatpush2.bf16.msra.mxu0 0
      %1041 = vmatprep.subr.bf16.mxu0 0
      %1042 = vmatpush2.bf16.msra.mxu0 0
      %1043 = vmatprep.mubr.bf16.mxu0 0
      %1044 = vmatmul.mubr.bf16.gmra.mxu0 %v994
      %v1045 = vpop.f32.mrf.mxu0
      %v1046 = vadd.f32 0.0, %v1045
      %v1047 = vpop.f32.mrf.mxu0
      %v1048 = vpop.f32.mrf.mxu0
      %v1049 = vadd.f32 0.0, %v1048
      %v1050 = vpop.f32.mrf.mxu0
      %1051 = vmatprep.mubr.bf16.mxu0 0
      %1052 = vmatmul.mubr.bf16.gmra.mxu0 %v997
      %v1053 = vpop.f32.mrf.mxu0
      %v1054 = vadd.f32 0.0, %v1053
      %v1055 = vpop.f32.mrf.mxu0
      %v1056 = vpop.f32.mrf.mxu0
      %v1057 = vadd.f32 0.0, %v1056
      %v1058 = vpop.f32.mrf.mxu0
      %1059 = vmatprep.mubr.bf16.mxu0 0
      %1060 = vmatmul.mubr.bf16.gmra.mxu0 %v1000
      %v1061 = vpop.f32.mrf.mxu0
      %v1062 = vadd.f32 0.0, %v1061
      %v1063 = vpop.f32.mrf.mxu0
      %v1064 = vpop.f32.mrf.mxu0
      %v1065 = vadd.f32 0.0, %v1064
      %v1066 = vpop.f32.mrf.mxu0
      %1067 = vmatprep.mubr.bf16.mxu0 0
      %1068 = vmatmul.mubr.bf16.gmra.mxu0 %v1003
      %v1069 = vpop.f32.mrf.mxu0
      %v1070 = vadd.f32 0.0, %v1069
      %v1071 = vpop.f32.mrf.mxu0
      %v1072 = vpop.f32.mrf.mxu0
      %v1073 = vadd.f32 0.0, %v1072
      %v1074 = vpop.f32.mrf.mxu0
      %1075 = vmatprep.mubr.bf16.mxu0 0
      %1076 = vmatmul.mubr.bf16.gmra.mxu0 %v1006
      %v1077 = vpop.f32.mrf.mxu0
      %v1078 = vadd.f32 0.0, %v1077
      %v1079 = vpop.f32.mrf.mxu0
      %v1080 = vpop.f32.mrf.mxu0
      %v1081 = vadd.f32 0.0, %v1080
      %v1082 = vpop.f32.mrf.mxu0
      %1083 = vdwg.mxu0
      %v1084 = vld [vmem:[%s192] sm:$0xff]
      %v1085 = vld [vmem:[%s192 + $0x8] sm:$0xff]
      %v1086 = vld [vmem:[%s192 + $0x10] sm:$0xff]
      %v1087 = vld [vmem:[%s192 + $0x18] sm:$0xff]
      %v1088 = vld [vmem:[%s192 + $0x20] sm:$0xff]
      %v1089 = vld [vmem:[%s192 + $0x28] sm:$0xff]
      %v1090 = vld [vmem:[%s192 + $0x30] sm:$0xff]
      %v1091 = vld [vmem:[%s192 + $0x38] sm:$0xff]
      %v1092 = vld [vmem:[%s192 + $0x40] sm:$0xff]
      %v1093 = vld [vmem:[%s192 + $0x48] sm:$0xff]
      %v1094 = vadd.f32 %v1084, %v1046
      %v1095 = vadd.f32 %v1085, %v1049
      %v1096 = vadd.f32 %v1086, %v1054
      %v1097 = vadd.f32 %v1087, %v1057
      %v1098 = vadd.f32 %v1088, %v1062
      %v1099 = vadd.f32 %v1089, %v1065
      %v1100 = vadd.f32 %v1090, %v1070
      %v1101 = vadd.f32 %v1091, %v1073
      %v1102 = vadd.f32 %v1092, %v1078
      %v1103 = vadd.f32 %v1093, %v1081
      %1104 = vst.msk [vmem:[%s192] sm:$0xff] %vm236, %v1094
      %1105 = vst.msk [vmem:[%s192 + $0x8] sm:$0xff] %vm236, %v1095
      %1106 = vst.msk [vmem:[%s192 + $0x10] sm:$0xff] %vm236, %v1096
      %1107 = vst.msk [vmem:[%s192 + $0x18] sm:$0xff] %vm236, %v1097
      %1108 = vst.msk [vmem:[%s192 + $0x20] sm:$0xff] %vm236, %v1098
      %1109 = vst.msk [vmem:[%s192 + $0x28] sm:$0xff] %vm236, %v1099
      %1110 = vst.msk [vmem:[%s192 + $0x30] sm:$0xff] %vm236, %v1100
      %1111 = vst.msk [vmem:[%s192 + $0x38] sm:$0xff] %vm236, %v1101
      %1112 = vst.msk [vmem:[%s192 + $0x40] sm:$0xff] %vm236, %v1102
      %1113 = vst.msk [vmem:[%s192 + $0x48] sm:$0xff] %vm236, %v1103
      %v1114 = vld [vmem:[%s724] sm:$0xf]
      %v1115 = vld [vmem:[%s724 + $0x4] sm:$0xf]
      %v1116 = vld [vmem:[%s724 + $0x8] sm:$0xf]
      %v1117 = vld [vmem:[%s724 + $0xc] sm:$0xf]
      %v1118 = vld [vmem:[%s724 + $0x10] sm:$0xf]
      %v1119 = vld [vmem:[%s724 + $0x14] sm:$0xf]
      %v1120 = vld [vmem:[%s724 + $0x18] sm:$0xf]
      %v1121 = vld [vmem:[%s724 + $0x1c] sm:$0xf]
      %v1122 = vld [vmem:[%s724 + $0x20] sm:$0xf]
      %v1123 = vld [vmem:[%s724 + $0x24] sm:$0xf]
      %v1124 = vld [vmem:[%s724 + $0x28] sm:$0xf]
      %s1125 = scalar_lea.vmem %s1, 20
      %v1126 = vld [vmem:[%s1125] sm:$0xf]
      %v1138 = vunpack.c.l.b16 %v1114
      %v1139 = vunpack.c.l.b16 %v1115
      %v1140 = vunpack.c.l.b16 %v1116
      %v1141 = vunpack.c.l.b16 %v1117
      %v1142 = vunpack.c.l.b16 %v1118
      %v1143 = vunpack.c.l.b16 %v1119
      %v1144 = vunpack.c.l.b16 %v1120
      %v1145 = vunpack.c.l.b16 %v1121
      %v1146 = vunpack.c.l.b16 %v1122
      %v1147 = vunpack.c.l.b16 %v1123
      %v1148 = vunpack.c.l.b16 %v1124
      %v1149 = vpack.c.b16 %v1139, %v1138
      %v1150 = vpack.c.b16 %v1141, %v1140
      %v1151 = vpack.c.b16 %v1143, %v1142
      %v1152 = vpack.c.b16 %v1145, %v1144
      %v1153 = vpack.c.b16 %v1147, %v1146
      %v1154 = vpack.c.b16 %v1148, %v1148
      %vm1155 = vcmask 1045504
      %v1156 = vrot.slane %v1149, 2
      %v1157 = vrot.slane %v1150, 2
      %v1158 = vsel %vm1155, %v1156, %v1157
      %v1159 = vrot.slane %v1151, 2
      %v1160 = vsel %vm1155, %v1157, %v1159
      %v1161 = vrot.slane %v1152, 2
      %v1162 = vsel %vm1155, %v1159, %v1161
      %v1163 = vrot.slane %v1153, 2
      %v1164 = vsel %vm1155, %v1161, %v1163
      %v1165 = vrot.slane %v1154, 2
      %v1166 = vsel %vm1155, %v1163, %v1165
      %v1168 = vsel %vm236, %v1158, 0
      %v1171 = vsel %vm236, %v1160, 0
      %v1174 = vsel %vm236, %v1162, 0
      %v1177 = vsel %vm236, %v1164, 0
      %v1180 = vsel %vm236, %v1166, 0
      %v1183 = vsel %vm252, %v1126, 0
      %1185 = vmatprep.subr.bf16.mxu0 0
      %1186 = vmatpush1.bf16.msra.mxu0 0
      %1187 = vmatprep.subr.bf16.mxu0 0
      %1188 = vmatpush1.bf16.msra.mxu0 0
      %1189 = vmatprep.subr.bf16.mxu0 0
      %1190 = vmatpush1.bf16.msra.mxu0 0
      %1191 = vmatprep.subr.bf16.mxu0 0
      %1192 = vmatpush1.bf16.msra.mxu0 0
      %1193 = vmatprep.subr.bf16.mxu0 0
      %1194 = vmatpush1.bf16.msra.mxu0 0
      %1195 = vmatprep.subr.bf16.mxu0 0
      %1196 = vmatpush1.bf16.msra.mxu0 0
      %1197 = vmatprep.subr.bf16.mxu0 0
      %1198 = vmatpush1.bf16.msra.mxu0 0
      %1199 = vmatprep.subr.bf16.mxu0 0
      %1200 = vmatpush1.bf16.msra.mxu0 %v1183
      %1201 = vmatprep.subr.bf16.mxu0 0
      %1202 = vmatpush2.bf16.msra.mxu0 0
      %1203 = vmatprep.subr.bf16.mxu0 0
      %1204 = vmatpush2.bf16.msra.mxu0 0
      %1205 = vmatprep.subr.bf16.mxu0 0
      %1206 = vmatpush2.bf16.msra.mxu0 0
      %1207 = vmatprep.subr.bf16.mxu0 0
      %1208 = vmatpush2.bf16.msra.mxu0 0
      %1209 = vmatprep.subr.bf16.mxu0 0
      %1210 = vmatpush2.bf16.msra.mxu0 0
      %1211 = vmatprep.subr.bf16.mxu0 0
      %1212 = vmatpush2.bf16.msra.mxu0 0
      %1213 = vmatprep.subr.bf16.mxu0 0
      %1214 = vmatpush2.bf16.msra.mxu0 0
      %1215 = vmatprep.subr.bf16.mxu0 0
      %1216 = vmatpush2.bf16.msra.mxu0 0
      %1217 = vmatprep.mubr.bf16.mxu0 0
      %1218 = vmatmul.mubr.bf16.gmra.mxu0 %v1168
      %v1219 = vpop.f32.mrf.mxu0
      %v1220 = vadd.f32 0.0, %v1219
      %v1221 = vpop.f32.mrf.mxu0
      %v1222 = vpop.f32.mrf.mxu0
      %v1223 = vadd.f32 0.0, %v1222
      %v1224 = vpop.f32.mrf.mxu0
      %1225 = vmatprep.mubr.bf16.mxu0 0
      %1226 = vmatmul.mubr.bf16.gmra.mxu0 %v1171
      %v1227 = vpop.f32.mrf.mxu0
      %v1228 = vadd.f32 0.0, %v1227
      %v1229 = vpop.f32.mrf.mxu0
      %v1230 = vpop.f32.mrf.mxu0
      %v1231 = vadd.f32 0.0, %v1230
      %v1232 = vpop.f32.mrf.mxu0
      %1233 = vmatprep.mubr.bf16.mxu0 0
      %1234 = vmatmul.mubr.bf16.gmra.mxu0 %v1174
      %v1235 = vpop.f32.mrf.mxu0
      %v1236 = vadd.f32 0.0, %v1235
      %v1237 = vpop.f32.mrf.mxu0
      %v1238 = vpop.f32.mrf.mxu0
      %v1239 = vadd.f32 0.0, %v1238
      %v1240 = vpop.f32.mrf.mxu0
      %1241 = vmatprep.mubr.bf16.mxu0 0
      %1242 = vmatmul.mubr.bf16.gmra.mxu0 %v1177
      %v1243 = vpop.f32.mrf.mxu0
      %v1244 = vadd.f32 0.0, %v1243
      %v1245 = vpop.f32.mrf.mxu0
      %v1246 = vpop.f32.mrf.mxu0
      %v1247 = vadd.f32 0.0, %v1246
      %v1248 = vpop.f32.mrf.mxu0
      %1249 = vmatprep.mubr.bf16.mxu0 0
      %1250 = vmatmul.mubr.bf16.gmra.mxu0 %v1180
      %v1251 = vpop.f32.mrf.mxu0
      %v1252 = vadd.f32 0.0, %v1251
      %v1253 = vpop.f32.mrf.mxu0
      %v1254 = vpop.f32.mrf.mxu0
      %v1255 = vadd.f32 0.0, %v1254
      %v1256 = vpop.f32.mrf.mxu0
      %1257 = vdwg.mxu0
      %v1258 = vld [vmem:[%s192] sm:$0xff]
      %v1259 = vld [vmem:[%s192 + $0x8] sm:$0xff]
      %v1260 = vld [vmem:[%s192 + $0x10] sm:$0xff]
      %v1261 = vld [vmem:[%s192 + $0x18] sm:$0xff]
      %v1262 = vld [vmem:[%s192 + $0x20] sm:$0xff]
      %v1263 = vld [vmem:[%s192 + $0x28] sm:$0xff]
      %v1264 = vld [vmem:[%s192 + $0x30] sm:$0xff]
      %v1265 = vld [vmem:[%s192 + $0x38] sm:$0xff]
      %v1266 = vld [vmem:[%s192 + $0x40] sm:$0xff]
      %v1267 = vld [vmem:[%s192 + $0x48] sm:$0xff]
      %v1268 = vadd.f32 %v1258, %v1220
      %v1269 = vadd.f32 %v1259, %v1223
      %v1270 = vadd.f32 %v1260, %v1228
      %v1271 = vadd.f32 %v1261, %v1231
      %v1272 = vadd.f32 %v1262, %v1236
      %v1273 = vadd.f32 %v1263, %v1239
      %v1274 = vadd.f32 %v1264, %v1244
      %v1275 = vadd.f32 %v1265, %v1247
      %v1276 = vadd.f32 %v1266, %v1252
      %v1277 = vadd.f32 %v1267, %v1255
      %1278 = vst.msk [vmem:[%s192] sm:$0xff] %vm236, %v1268
      %1279 = vst.msk [vmem:[%s192 + $0x8] sm:$0xff] %vm236, %v1269
      %1280 = vst.msk [vmem:[%s192 + $0x10] sm:$0xff] %vm236, %v1270
      %1281 = vst.msk [vmem:[%s192 + $0x18] sm:$0xff] %vm236, %v1271
      %1282 = vst.msk [vmem:[%s192 + $0x20] sm:$0xff] %vm236, %v1272
      %1283 = vst.msk [vmem:[%s192 + $0x28] sm:$0xff] %vm236, %v1273
      %1284 = vst.msk [vmem:[%s192 + $0x30] sm:$0xff] %vm236, %v1274
      %1285 = vst.msk [vmem:[%s192 + $0x38] sm:$0xff] %vm236, %v1275
      %1286 = vst.msk [vmem:[%s192 + $0x40] sm:$0xff] %vm236, %v1276
      %1287 = vst.msk [vmem:[%s192 + $0x48] sm:$0xff] %vm236, %v1277
      %s1288 = sadd.s32 %s195, 32
      %s1289 = sshra.s32 %s1288, 3
      %s1290 = sand.u32 %s1288, 7
      %s1291 = smul.addr %s1289, 4
      %s1292 = scalar_lea.vmem %s183, %s1291
      %v1293 = vld [vmem:[%s1292] sm:$0xf]
      %v1294 = vld [vmem:[%s1292 + $0x4] sm:$0xf]
      %v1295 = vld [vmem:[%s1292 + $0x8] sm:$0xf]
      %v1296 = vld [vmem:[%s1292 + $0xc] sm:$0xf]
      %v1297 = vld [vmem:[%s1292 + $0x10] sm:$0xf]
      %v1298 = vld [vmem:[%s1292 + $0x14] sm:$0xf]
      %v1299 = vld [vmem:[%s1292 + $0x18] sm:$0xf]
      %v1300 = vld [vmem:[%s1292 + $0x1c] sm:$0xf]
      %v1301 = vld [vmem:[%s1292 + $0x20] sm:$0xf]
      %v1302 = vld [vmem:[%s1292 + $0x24] sm:$0xf]
      %v1303 = vld [vmem:[%s1292 + $0x28] sm:$0xf]
      %s1304 = scalar_lea.vmem %s1, 24
      %v1305 = vld [vmem:[%s1304] sm:$0xf]
      %v1317 = vunpack.c.l.b16 %v1293
      %v1318 = vunpack.c.l.b16 %v1294
      %v1319 = vunpack.c.l.b16 %v1295
      %v1320 = vunpack.c.l.b16 %v1296
      %v1321 = vunpack.c.l.b16 %v1297
      %v1322 = vunpack.c.l.b16 %v1298
      %v1323 = vunpack.c.l.b16 %v1299
      %v1324 = vunpack.c.l.b16 %v1300
      %v1325 = vunpack.c.l.b16 %v1301
      %v1326 = vunpack.c.l.b16 %v1302
      %v1327 = vunpack.c.l.b16 %v1303
      %v1328 = vpack.c.b16 %v1318, %v1317
      %v1329 = vpack.c.b16 %v1320, %v1319
      %v1330 = vpack.c.b16 %v1322, %v1321
      %v1331 = vpack.c.b16 %v1324, %v1323
      %v1332 = vpack.c.b16 %v1326, %v1325
      %v1333 = vpack.c.b16 %v1327, %v1327
      %v1334 = vrot.slane %v1328, 2
      %v1335 = vrot.slane %v1329, 2
      %v1336 = vsel %vm1155, %v1334, %v1335
      %v1337 = vrot.slane %v1330, 2
      %v1338 = vsel %vm1155, %v1335, %v1337
      %v1339 = vrot.slane %v1331, 2
      %v1340 = vsel %vm1155, %v1337, %v1339
      %v1341 = vrot.slane %v1332, 2
      %v1342 = vsel %vm1155, %v1339, %v1341
      %v1343 = vrot.slane %v1333, 2
      %v1344 = vsel %vm1155, %v1341, %v1343
      %v1346 = vsel %vm236, %v1336, 0
      %v1349 = vsel %vm236, %v1338, 0
      %v1352 = vsel %vm236, %v1340, 0
      %v1355 = vsel %vm236, %v1342, 0
      %v1358 = vsel %vm236, %v1344, 0
      %v1361 = vsel %vm252, %v1305, 0
      %1363 = vmatprep.subr.bf16.mxu0 0
      %1364 = vmatpush1.bf16.msra.mxu0 0
      %1365 = vmatprep.subr.bf16.mxu0 0
      %1366 = vmatpush1.bf16.msra.mxu0 0
      %1367 = vmatprep.subr.bf16.mxu0 0
      %1368 = vmatpush1.bf16.msra.mxu0 0
      %1369 = vmatprep.subr.bf16.mxu0 0
      %1370 = vmatpush1.bf16.msra.mxu0 0
      %1371 = vmatprep.subr.bf16.mxu0 0
      %1372 = vmatpush1.bf16.msra.mxu0 0
      %1373 = vmatprep.subr.bf16.mxu0 0
      %1374 = vmatpush1.bf16.msra.mxu0 0
      %1375 = vmatprep.subr.bf16.mxu0 0
      %1376 = vmatpush1.bf16.msra.mxu0 0
      %1377 = vmatprep.subr.bf16.mxu0 0
      %1378 = vmatpush1.bf16.msra.mxu0 %v1361
      %1379 = vmatprep.subr.bf16.mxu0 0
      %1380 = vmatpush2.bf16.msra.mxu0 0
      %1381 = vmatprep.subr.bf16.mxu0 0
      %1382 = vmatpush2.bf16.msra.mxu0 0
      %1383 = vmatprep.subr.bf16.mxu0 0
      %1384 = vmatpush2.bf16.msra.mxu0 0
      %1385 = vmatprep.subr.bf16.mxu0 0
      %1386 = vmatpush2.bf16.msra.mxu0 0
      %1387 = vmatprep.subr.bf16.mxu0 0
      %1388 = vmatpush2.bf16.msra.mxu0 0
      %1389 = vmatprep.subr.bf16.mxu0 0
      %1390 = vmatpush2.bf16.msra.mxu0 0
      %1391 = vmatprep.subr.bf16.mxu0 0
      %1392 = vmatpush2.bf16.msra.mxu0 0
      %1393 = vmatprep.subr.bf16.mxu0 0
      %1394 = vmatpush2.bf16.msra.mxu0 0
      %1395 = vmatprep.mubr.bf16.mxu0 0
      %1396 = vmatmul.mubr.bf16.gmra.mxu0 %v1346
      %v1397 = vpop.f32.mrf.mxu0
      %v1398 = vadd.f32 0.0, %v1397
      %v1399 = vpop.f32.mrf.mxu0
      %v1400 = vpop.f32.mrf.mxu0
      %v1401 = vadd.f32 0.0, %v1400
      %v1402 = vpop.f32.mrf.mxu0
      %1403 = vmatprep.mubr.bf16.mxu0 0
      %1404 = vmatmul.mubr.bf16.gmra.mxu0 %v1349
      %v1405 = vpop.f32.mrf.mxu0
      %v1406 = vadd.f32 0.0, %v1405
      %v1407 = vpop.f32.mrf.mxu0
      %v1408 = vpop.f32.mrf.mxu0
      %v1409 = vadd.f32 0.0, %v1408
      %v1410 = vpop.f32.mrf.mxu0
      %1411 = vmatprep.mubr.bf16.mxu0 0
      %1412 = vmatmul.mubr.bf16.gmra.mxu0 %v1352
      %v1413 = vpop.f32.mrf.mxu0
      %v1414 = vadd.f32 0.0, %v1413
      %v1415 = vpop.f32.mrf.mxu0
      %v1416 = vpop.f32.mrf.mxu0
      %v1417 = vadd.f32 0.0, %v1416
      %v1418 = vpop.f32.mrf.mxu0
      %1419 = vmatprep.mubr.bf16.mxu0 0
      %1420 = vmatmul.mubr.bf16.gmra.mxu0 %v1355
      %v1421 = vpop.f32.mrf.mxu0
      %v1422 = vadd.f32 0.0, %v1421
      %v1423 = vpop.f32.mrf.mxu0
      %v1424 = vpop.f32.mrf.mxu0
      %v1425 = vadd.f32 0.0, %v1424
      %v1426 = vpop.f32.mrf.mxu0
      %1427 = vmatprep.mubr.bf16.mxu0 0
      %1428 = vmatmul.mubr.bf16.gmra.mxu0 %v1358
      %v1429 = vpop.f32.mrf.mxu0
      %v1430 = vadd.f32 0.0, %v1429
      %v1431 = vpop.f32.mrf.mxu0
      %v1432 = vpop.f32.mrf.mxu0
      %v1433 = vadd.f32 0.0, %v1432
      %v1434 = vpop.f32.mrf.mxu0
      %1435 = vdwg.mxu0
      %v1436 = vld [vmem:[%s192] sm:$0xff]
      %v1437 = vld [vmem:[%s192 + $0x8] sm:$0xff]
      %v1438 = vld [vmem:[%s192 + $0x10] sm:$0xff]
      %v1439 = vld [vmem:[%s192 + $0x18] sm:$0xff]
      %v1440 = vld [vmem:[%s192 + $0x20] sm:$0xff]
      %v1441 = vld [vmem:[%s192 + $0x28] sm:$0xff]
      %v1442 = vld [vmem:[%s192 + $0x30] sm:$0xff]
      %v1443 = vld [vmem:[%s192 + $0x38] sm:$0xff]
      %v1444 = vld [vmem:[%s192 + $0x40] sm:$0xff]
      %v1445 = vld [vmem:[%s192 + $0x48] sm:$0xff]
      %v1446 = vadd.f32 %v1436, %v1398
      %v1447 = vadd.f32 %v1437, %v1401
      %v1448 = vadd.f32 %v1438, %v1406
      %v1449 = vadd.f32 %v1439, %v1409
      %v1450 = vadd.f32 %v1440, %v1414
      %v1451 = vadd.f32 %v1441, %v1417
      %v1452 = vadd.f32 %v1442, %v1422
      %v1453 = vadd.f32 %v1443, %v1425
      %v1454 = vadd.f32 %v1444, %v1430
      %v1455 = vadd.f32 %v1445, %v1433
      %1456 = vst.msk [vmem:[%s192] sm:$0xff] %vm236, %v1446
      %1457 = vst.msk [vmem:[%s192 + $0x8] sm:$0xff] %vm236, %v1447
      %1458 = vst.msk [vmem:[%s192 + $0x10] sm:$0xff] %vm236, %v1448
      %1459 = vst.msk [vmem:[%s192 + $0x18] sm:$0xff] %vm236, %v1449
      %1460 = vst.msk [vmem:[%s192 + $0x20] sm:$0xff] %vm236, %v1450
      %1461 = vst.msk [vmem:[%s192 + $0x28] sm:$0xff] %vm236, %v1451
      %1462 = vst.msk [vmem:[%s192 + $0x30] sm:$0xff] %vm236, %v1452
      %1463 = vst.msk [vmem:[%s192 + $0x38] sm:$0xff] %vm236, %v1453
      %1464 = vst.msk [vmem:[%s192 + $0x40] sm:$0xff] %vm236, %v1454
      %1465 = vst.msk [vmem:[%s192 + $0x48] sm:$0xff] %vm236, %v1455
      %v1466 = vld [vmem:[%s1292] sm:$0xf]
      %v1467 = vld [vmem:[%s1292 + $0x4] sm:$0xf]
      %v1468 = vld [vmem:[%s1292 + $0x8] sm:$0xf]
      %v1469 = vld [vmem:[%s1292 + $0xc] sm:$0xf]
      %v1470 = vld [vmem:[%s1292 + $0x10] sm:$0xf]
      %v1471 = vld [vmem:[%s1292 + $0x14] sm:$0xf]
      %v1472 = vld [vmem:[%s1292 + $0x18] sm:$0xf]
      %v1473 = vld [vmem:[%s1292 + $0x1c] sm:$0xf]
      %v1474 = vld [vmem:[%s1292 + $0x20] sm:$0xf]
      %v1475 = vld [vmem:[%s1292 + $0x24] sm:$0xf]
      %v1476 = vld [vmem:[%s1292 + $0x28] sm:$0xf]
      %s1477 = scalar_lea.vmem %s1, 28
      %v1478 = vld [vmem:[%s1477] sm:$0xf]
      %v1490 = vunpack.c.l.b16 %v1466
      %v1491 = vunpack.c.l.b16 %v1467
      %v1492 = vunpack.c.l.b16 %v1468
      %v1493 = vunpack.c.l.b16 %v1469
      %v1494 = vunpack.c.l.b16 %v1470
      %v1495 = vunpack.c.l.b16 %v1471
      %v1496 = vunpack.c.l.b16 %v1472
      %v1497 = vunpack.c.l.b16 %v1473
      %v1498 = vunpack.c.l.b16 %v1474
      %v1499 = vunpack.c.l.b16 %v1475
      %v1500 = vunpack.c.l.b16 %v1476
      %v1501 = vpack.c.b16 %v1491, %v1490
      %v1502 = vpack.c.b16 %v1493, %v1492
      %v1503 = vpack.c.b16 %v1495, %v1494
      %v1504 = vpack.c.b16 %v1497, %v1496
      %v1505 = vpack.c.b16 %v1499, %v1498
      %v1506 = vpack.c.b16 %v1500, %v1500
      %vm1507 = vsmask.f32 5376
      %v1509 = vshrl.u32 %v1501, 16
      %v1511 = vrot.slane %v1509, 2
      %v1512 = vshll.u32 %v1501, 16
      %v1514 = vrot.slane %v1512, 3
      %v1515 = vor.u32 %v1511, %v1514
      %v1517 = vshrl.u32 %v1502, 16
      %v1519 = vrot.slane %v1517, 2
      %v1520 = vshll.u32 %v1502, 16
      %v1522 = vrot.slane %v1520, 3
      %v1523 = vor.u32 %v1519, %v1522
      %v1524 = vsel %vm1507, %v1515, %v1523
      %v1526 = vshrl.u32 %v1503, 16
      %v1528 = vrot.slane %v1526, 2
      %v1529 = vshll.u32 %v1503, 16
      %v1531 = vrot.slane %v1529, 3
      %v1532 = vor.u32 %v1528, %v1531
      %v1533 = vsel %vm1507, %v1523, %v1532
      %v1535 = vshrl.u32 %v1504, 16
      %v1537 = vrot.slane %v1535, 2
      %v1538 = vshll.u32 %v1504, 16
      %v1540 = vrot.slane %v1538, 3
      %v1541 = vor.u32 %v1537, %v1540
      %v1542 = vsel %vm1507, %v1532, %v1541
      %v1544 = vshrl.u32 %v1505, 16
      %v1546 = vrot.slane %v1544, 2
      %v1547 = vshll.u32 %v1505, 16
      %v1549 = vrot.slane %v1547, 3
      %v1550 = vor.u32 %v1546, %v1549
      %v1551 = vsel %vm1507, %v1541, %v1550
      %v1553 = vshrl.u32 %v1506, 16
      %v1555 = vrot.slane %v1553, 2
      %v1556 = vshll.u32 %v1506, 16
      %v1558 = vrot.slane %v1556, 3
      %v1559 = vor.u32 %v1555, %v1558
      %v1560 = vsel %vm1507, %v1550, %v1559
      %v1562 = vsel %vm236, %v1524, 0
      %v1565 = vsel %vm236, %v1533, 0
      %v1568 = vsel %vm236, %v1542, 0
      %v1571 = vsel %vm236, %v1551, 0
      %v1574 = vsel %vm236, %v1560, 0
      %v1577 = vsel %vm252, %v1478, 0
      %1579 = vmatprep.subr.bf16.mxu0 0
      %1580 = vmatpush1.bf16.msra.mxu0 0
      %1581 = vmatprep.subr.bf16.mxu0 0
      %1582 = vmatpush1.bf16.msra.mxu0 0
      %1583 = vmatprep.subr.bf16.mxu0 0
      %1584 = vmatpush1.bf16.msra.mxu0 0
      %1585 = vmatprep.subr.bf16.mxu0 0
      %1586 = vmatpush1.bf16.msra.mxu0 0
      %1587 = vmatprep.subr.bf16.mxu0 0
      %1588 = vmatpush1.bf16.msra.mxu0 0
      %1589 = vmatprep.subr.bf16.mxu0 0
      %1590 = vmatpush1.bf16.msra.mxu0 0
      %1591 = vmatprep.subr.bf16.mxu0 0
      %1592 = vmatpush1.bf16.msra.mxu0 0
      %1593 = vmatprep.subr.bf16.mxu0 0
      %1594 = vmatpush1.bf16.msra.mxu0 %v1577
      %1595 = vmatprep.subr.bf16.mxu0 0
      %1596 = vmatpush2.bf16.msra.mxu0 0
      %1597 = vmatprep.subr.bf16.mxu0 0
      %1598 = vmatpush2.bf16.msra.mxu0 0
      %1599 = vmatprep.subr.bf16.mxu0 0
      %1600 = vmatpush2.bf16.msra.mxu0 0
      %1601 = vmatprep.subr.bf16.mxu0 0
      %1602 = vmatpush2.bf16.msra.mxu0 0
      %1603 = vmatprep.subr.bf16.mxu0 0
      %1604 = vmatpush2.bf16.msra.mxu0 0
      %1605 = vmatprep.subr.bf16.mxu0 0
      %1606 = vmatpush2.bf16.msra.mxu0 0
      %1607 = vmatprep.subr.bf16.mxu0 0
      %1608 = vmatpush2.bf16.msra.mxu0 0
      %1609 = vmatprep.subr.bf16.mxu0 0
      %1610 = vmatpush2.bf16.msra.mxu0 0
      %1611 = vmatprep.mubr.bf16.mxu0 0
      %1612 = vmatmul.mubr.bf16.gmra.mxu0 %v1562
      %v1613 = vpop.f32.mrf.mxu0
      %v1614 = vadd.f32 0.0, %v1613
      %v1615 = vpop.f32.mrf.mxu0
      %v1616 = vpop.f32.mrf.mxu0
      %v1617 = vadd.f32 0.0, %v1616
      %v1618 = vpop.f32.mrf.mxu0
      %1619 = vmatprep.mubr.bf16.mxu0 0
      %1620 = vmatmul.mubr.bf16.gmra.mxu0 %v1565
      %v1621 = vpop.f32.mrf.mxu0
      %v1622 = vadd.f32 0.0, %v1621
      %v1623 = vpop.f32.mrf.mxu0
      %v1624 = vpop.f32.mrf.mxu0
      %v1625 = vadd.f32 0.0, %v1624
      %v1626 = vpop.f32.mrf.mxu0
      %1627 = vmatprep.mubr.bf16.mxu0 0
      %1628 = vmatmul.mubr.bf16.gmra.mxu0 %v1568
      %v1629 = vpop.f32.mrf.mxu0
      %v1630 = vadd.f32 0.0, %v1629
      %v1631 = vpop.f32.mrf.mxu0
      %v1632 = vpop.f32.mrf.mxu0
      %v1633 = vadd.f32 0.0, %v1632
      %v1634 = vpop.f32.mrf.mxu0
      %1635 = vmatprep.mubr.bf16.mxu0 0
      %1636 = vmatmul.mubr.bf16.gmra.mxu0 %v1571
      %v1637 = vpop.f32.mrf.mxu0
      %v1638 = vadd.f32 0.0, %v1637
      %v1639 = vpop.f32.mrf.mxu0
      %v1640 = vpop.f32.mrf.mxu0
      %v1641 = vadd.f32 0.0, %v1640
      %v1642 = vpop.f32.mrf.mxu0
      %1643 = vmatprep.mubr.bf16.mxu0 0
      %1644 = vmatmul.mubr.bf16.gmra.mxu0 %v1574
      %v1645 = vpop.f32.mrf.mxu0
      %v1646 = vadd.f32 0.0, %v1645
      %v1647 = vpop.f32.mrf.mxu0
      %v1648 = vpop.f32.mrf.mxu0
      %v1649 = vadd.f32 0.0, %v1648
      %v1650 = vpop.f32.mrf.mxu0
      %1651 = vdwg.mxu0
      %v1652 = vld [vmem:[%s192] sm:$0xff]
      %v1653 = vld [vmem:[%s192 + $0x8] sm:$0xff]
      %v1654 = vld [vmem:[%s192 + $0x10] sm:$0xff]
      %v1655 = vld [vmem:[%s192 + $0x18] sm:$0xff]
      %v1656 = vld [vmem:[%s192 + $0x20] sm:$0xff]
      %v1657 = vld [vmem:[%s192 + $0x28] sm:$0xff]
      %v1658 = vld [vmem:[%s192 + $0x30] sm:$0xff]
      %v1659 = vld [vmem:[%s192 + $0x38] sm:$0xff]
      %v1660 = vld [vmem:[%s192 + $0x40] sm:$0xff]
      %v1661 = vld [vmem:[%s192 + $0x48] sm:$0xff]
      %v1662 = vadd.f32 %v1652, %v1614
      %v1663 = vadd.f32 %v1653, %v1617
      %v1664 = vadd.f32 %v1654, %v1622
      %v1665 = vadd.f32 %v1655, %v1625
      %v1666 = vadd.f32 %v1656, %v1630
      %v1667 = vadd.f32 %v1657, %v1633
      %v1668 = vadd.f32 %v1658, %v1638
      %v1669 = vadd.f32 %v1659, %v1641
      %v1670 = vadd.f32 %v1660, %v1646
      %v1671 = vadd.f32 %v1661, %v1649
      %1672 = vst.msk [vmem:[%s192] sm:$0xff] %vm236, %v1662
      %1673 = vst.msk [vmem:[%s192 + $0x8] sm:$0xff] %vm236, %v1663
      %1674 = vst.msk [vmem:[%s192 + $0x10] sm:$0xff] %vm236, %v1664
      %1675 = vst.msk [vmem:[%s192 + $0x18] sm:$0xff] %vm236, %v1665
      %1676 = vst.msk [vmem:[%s192 + $0x20] sm:$0xff] %vm236, %v1666
      %1677 = vst.msk [vmem:[%s192 + $0x28] sm:$0xff] %vm236, %v1667
      %1678 = vst.msk [vmem:[%s192 + $0x30] sm:$0xff] %vm236, %v1668
      %1679 = vst.msk [vmem:[%s192 + $0x38] sm:$0xff] %vm236, %v1669
      %1680 = vst.msk [vmem:[%s192 + $0x40] sm:$0xff] %vm236, %v1670
      %1681 = vst.msk [vmem:[%s192 + $0x48] sm:$0xff] %vm236, %v1671
      %v1682 = vld [vmem:[%s1292] sm:$0xf]
      %v1683 = vld [vmem:[%s1292 + $0x4] sm:$0xf]
      %v1684 = vld [vmem:[%s1292 + $0x8] sm:$0xf]
      %v1685 = vld [vmem:[%s1292 + $0xc] sm:$0xf]
      %v1686 = vld [vmem:[%s1292 + $0x10] sm:$0xf]
      %v1687 = vld [vmem:[%s1292 + $0x14] sm:$0xf]
      %v1688 = vld [vmem:[%s1292 + $0x18] sm:$0xf]
      %v1689 = vld [vmem:[%s1292 + $0x1c] sm:$0xf]
      %v1690 = vld [vmem:[%s1292 + $0x20] sm:$0xf]
      %v1691 = vld [vmem:[%s1292 + $0x24] sm:$0xf]
      %v1692 = vld [vmem:[%s1292 + $0x28] sm:$0xf]
      %s1693 = scalar_lea.vmem %s1, 32
      %v1694 = vld [vmem:[%s1693] sm:$0xf]
      %v1706 = vunpack.c.l.b16 %v1682
      %v1707 = vunpack.c.l.b16 %v1683
      %v1708 = vunpack.c.l.b16 %v1684
      %v1709 = vunpack.c.l.b16 %v1685
      %v1710 = vunpack.c.l.b16 %v1686
      %v1711 = vunpack.c.l.b16 %v1687
      %v1712 = vunpack.c.l.b16 %v1688
      %v1713 = vunpack.c.l.b16 %v1689
      %v1714 = vunpack.c.l.b16 %v1690
      %v1715 = vunpack.c.l.b16 %v1691
      %v1716 = vunpack.c.l.b16 %v1692
      %v1717 = vpack.c.b16 %v1707, %v1706
      %v1718 = vpack.c.b16 %v1709, %v1708
      %v1719 = vpack.c.b16 %v1711, %v1710
      %v1720 = vpack.c.b16 %v1713, %v1712
      %v1721 = vpack.c.b16 %v1715, %v1714
      %v1722 = vpack.c.b16 %v1716, %v1716
      %vm1723 = vcmask 1044480
      %v1724 = vrot.slane %v1717, 3
      %v1725 = vrot.slane %v1718, 3
      %v1726 = vsel %vm1723, %v1724, %v1725
      %v1727 = vrot.slane %v1719, 3
      %v1728 = vsel %vm1723, %v1725, %v1727
      %v1729 = vrot.slane %v1720, 3
      %v1730 = vsel %vm1723, %v1727, %v1729
      %v1731 = vrot.slane %v1721, 3
      %v1732 = vsel %vm1723, %v1729, %v1731
      %v1733 = vrot.slane %v1722, 3
      %v1734 = vsel %vm1723, %v1731, %v1733
      %v1736 = vsel %vm236, %v1726, 0
      %v1739 = vsel %vm236, %v1728, 0
      %v1742 = vsel %vm236, %v1730, 0
      %v1745 = vsel %vm236, %v1732, 0
      %v1748 = vsel %vm236, %v1734, 0
      %v1751 = vsel %vm252, %v1694, 0
      %1753 = vmatprep.subr.bf16.mxu0 0
      %1754 = vmatpush1.bf16.msra.mxu0 0
      %1755 = vmatprep.subr.bf16.mxu0 0
      %1756 = vmatpush1.bf16.msra.mxu0 0
      %1757 = vmatprep.subr.bf16.mxu0 0
      %1758 = vmatpush1.bf16.msra.mxu0 0
      %1759 = vmatprep.subr.bf16.mxu0 0
      %1760 = vmatpush1.bf16.msra.mxu0 0
      %1761 = vmatprep.subr.bf16.mxu0 0
      %1762 = vmatpush1.bf16.msra.mxu0 0
      %1763 = vmatprep.subr.bf16.mxu0 0
      %1764 = vmatpush1.bf16.msra.mxu0 0
      %1765 = vmatprep.subr.bf16.mxu0 0
      %1766 = vmatpush1.bf16.msra.mxu0 0
      %1767 = vmatprep.subr.bf16.mxu0 0
      %1768 = vmatpush1.bf16.msra.mxu0 %v1751
      %1769 = vmatprep.subr.bf16.mxu0 0
      %1770 = vmatpush2.bf16.msra.mxu0 0
      %1771 = vmatprep.subr.bf16.mxu0 0
      %1772 = vmatpush2.bf16.msra.mxu0 0
      %1773 = vmatprep.subr.bf16.mxu0 0
      %1774 = vmatpush2.bf16.msra.mxu0 0
      %1775 = vmatprep.subr.bf16.mxu0 0
      %1776 = vmatpush2.bf16.msra.mxu0 0
      %1777 = vmatprep.subr.bf16.mxu0 0
      %1778 = vmatpush2.bf16.msra.mxu0 0
      %1779 = vmatprep.subr.bf16.mxu0 0
      %1780 = vmatpush2.bf16.msra.mxu0 0
      %1781 = vmatprep.subr.bf16.mxu0 0
      %1782 = vmatpush2.bf16.msra.mxu0 0
      %1783 = vmatprep.subr.bf16.mxu0 0
      %1784 = vmatpush2.bf16.msra.mxu0 0
      %1785 = vmatprep.mubr.bf16.mxu0 0
      %1786 = vmatmul.mubr.bf16.gmra.mxu0 %v1736
      %v1787 = vpop.f32.mrf.mxu0
      %v1788 = vadd.f32 0.0, %v1787
      %v1789 = vpop.f32.mrf.mxu0
      %v1790 = vpop.f32.mrf.mxu0
      %v1791 = vadd.f32 0.0, %v1790
      %v1792 = vpop.f32.mrf.mxu0
      %1793 = vmatprep.mubr.bf16.mxu0 0
      %1794 = vmatmul.mubr.bf16.gmra.mxu0 %v1739
      %v1795 = vpop.f32.mrf.mxu0
      %v1796 = vadd.f32 0.0, %v1795
      %v1797 = vpop.f32.mrf.mxu0
      %v1798 = vpop.f32.mrf.mxu0
      %v1799 = vadd.f32 0.0, %v1798
      %v1800 = vpop.f32.mrf.mxu0
      %1801 = vmatprep.mubr.bf16.mxu0 0
      %1802 = vmatmul.mubr.bf16.gmra.mxu0 %v1742
      %v1803 = vpop.f32.mrf.mxu0
      %v1804 = vadd.f32 0.0, %v1803
      %v1805 = vpop.f32.mrf.mxu0
      %v1806 = vpop.f32.mrf.mxu0
      %v1807 = vadd.f32 0.0, %v1806
      %v1808 = vpop.f32.mrf.mxu0
      %1809 = vmatprep.mubr.bf16.mxu0 0
      %1810 = vmatmul.mubr.bf16.gmra.mxu0 %v1745
      %v1811 = vpop.f32.mrf.mxu0
      %v1812 = vadd.f32 0.0, %v1811
      %v1813 = vpop.f32.mrf.mxu0
      %v1814 = vpop.f32.mrf.mxu0
      %v1815 = vadd.f32 0.0, %v1814
      %v1816 = vpop.f32.mrf.mxu0
      %1817 = vmatprep.mubr.bf16.mxu0 0
      %1818 = vmatmul.mubr.bf16.gmra.mxu0 %v1748
      %v1819 = vpop.f32.mrf.mxu0
      %v1820 = vadd.f32 0.0, %v1819
      %v1821 = vpop.f32.mrf.mxu0
      %v1822 = vpop.f32.mrf.mxu0
      %v1823 = vadd.f32 0.0, %v1822
      %v1824 = vpop.f32.mrf.mxu0
      %1825 = vdwg.mxu0
      %v1826 = vld [vmem:[%s192] sm:$0xff]
      %v1827 = vld [vmem:[%s192 + $0x8] sm:$0xff]
      %v1828 = vld [vmem:[%s192 + $0x10] sm:$0xff]
      %v1829 = vld [vmem:[%s192 + $0x18] sm:$0xff]
      %v1830 = vld [vmem:[%s192 + $0x20] sm:$0xff]
      %v1831 = vld [vmem:[%s192 + $0x28] sm:$0xff]
      %v1832 = vld [vmem:[%s192 + $0x30] sm:$0xff]
      %v1833 = vld [vmem:[%s192 + $0x38] sm:$0xff]
      %v1834 = vld [vmem:[%s192 + $0x40] sm:$0xff]
      %v1835 = vld [vmem:[%s192 + $0x48] sm:$0xff]
      %v1836 = vadd.f32 %v1826, %v1788
      %v1837 = vadd.f32 %v1827, %v1791
      %v1838 = vadd.f32 %v1828, %v1796
      %v1839 = vadd.f32 %v1829, %v1799
      %v1840 = vadd.f32 %v1830, %v1804
      %v1841 = vadd.f32 %v1831, %v1807
      %v1842 = vadd.f32 %v1832, %v1812
      %v1843 = vadd.f32 %v1833, %v1815
      %v1844 = vadd.f32 %v1834, %v1820
      %v1845 = vadd.f32 %v1835, %v1823
      %1846 = vst.msk [vmem:[%s192] sm:$0xff] %vm236, %v1836
      %1847 = vst.msk [vmem:[%s192 + $0x8] sm:$0xff] %vm236, %v1837
      %1848 = vst.msk [vmem:[%s192 + $0x10] sm:$0xff] %vm236, %v1838
      %1849 = vst.msk [vmem:[%s192 + $0x18] sm:$0xff] %vm236, %v1839
      %1850 = vst.msk [vmem:[%s192 + $0x20] sm:$0xff] %vm236, %v1840
      %1851 = vst.msk [vmem:[%s192 + $0x28] sm:$0xff] %vm236, %v1841
      %1852 = vst.msk [vmem:[%s192 + $0x30] sm:$0xff] %vm236, %v1842
      %1853 = vst.msk [vmem:[%s192 + $0x38] sm:$0xff] %vm236, %v1843
      %1854 = vst.msk [vmem:[%s192 + $0x40] sm:$0xff] %vm236, %v1844
      %1855 = vst.msk [vmem:[%s192 + $0x48] sm:$0xff] %vm236, %v1845
      %v1856 = vld [vmem:[%s192] sm:$0xff]
      %v1857 = vld [vmem:[%s192 + $0x8] sm:$0xff]
      %v1858 = vld [vmem:[%s192 + $0x10] sm:$0xff]
      %v1859 = vld [vmem:[%s192 + $0x18] sm:$0xff]
      %v1860 = vld [vmem:[%s192 + $0x20] sm:$0xff]
      %v1861 = vld [vmem:[%s192 + $0x28] sm:$0xff]
      %v1862 = vld [vmem:[%s192 + $0x30] sm:$0xff]
      %v1863 = vld [vmem:[%s192 + $0x38] sm:$0xff]
      %v1864 = vld [vmem:[%s192 + $0x40] sm:$0xff]
      %v1865 = vld [vmem:[%s192 + $0x48] sm:$0xff]
      %v1866 = vld [vmem:[%s2] sm:$0x1]
      %v1868 = vlaneseq
      %v1869 = vshrl.u32 %v1868, 7
      %v1870 = vsub.s32 0, %v1869
      %v1871 = vrot.slane %v1866, %v1870
      %v1873 = vmul.f32 %v1856, %v1871
      %v1874 = vmul.f32 %v1857, %v1871
      %v1875 = vmul.f32 %v1858, %v1871
      %v1876 = vmul.f32 %v1859, %v1871
      %v1877 = vmul.f32 %v1860, %v1871
      %v1878 = vmul.f32 %v1861, %v1871
      %v1879 = vmul.f32 %v1862, %v1871
      %v1880 = vmul.f32 %v1863, %v1871
      %v1881 = vmul.f32 %v1864, %v1871
      %v1882 = vmul.f32 %v1865, %v1871
      %1883 = vst.msk [vmem:[%s192] sm:$0xff] %vm236, %v1873
      %1884 = vst.msk [vmem:[%s192 + $0x8] sm:$0xff] %vm236, %v1874
      %1885 = vst.msk [vmem:[%s192 + $0x10] sm:$0xff] %vm236, %v1875
      %1886 = vst.msk [vmem:[%s192 + $0x18] sm:$0xff] %vm236, %v1876
      %1887 = vst.msk [vmem:[%s192 + $0x20] sm:$0xff] %vm236, %v1877
      %1888 = vst.msk [vmem:[%s192 + $0x28] sm:$0xff] %vm236, %v1878
      %1889 = vst.msk [vmem:[%s192 + $0x30] sm:$0xff] %vm236, %v1879
      %1890 = vst.msk [vmem:[%s192 + $0x38] sm:$0xff] %vm236, %v1880
      %1891 = vst.msk [vmem:[%s192 + $0x40] sm:$0xff] %vm236, %v1881
      %1892 = vst.msk [vmem:[%s192 + $0x48] sm:$0xff] %vm236, %v1882
      %s1893 = smul.u32 10, %s19
      %p1894 = scmp.lt.s32.totalorder %s18, 1
      %s1895 = scalar_select %p1894, %s18, 1
      %p1896 = scmp.lt.s32.totalorder %s1893, 39
      %s1897 = scalar_select %p1896, %s1893, 39
      %s1898 = smul.addr %s1895, 40
      %s1899 = sadd.s32 %s1897, %s1898
      %s1900 = smul.addr %s1899, 8
      %s1901 = scalar_lea.vmem %s3, %s1900
      // Predicated region
      $region33: #{tpu_custom_call.1} parent=31 // pred_check
        %p1902 = pneg %p114
      $region34: #{tpu_custom_call.1} parent=31 // pred_check_branch
        %1904 = sbr.rel (%p1902) target = $region36
      $region35: #{tpu_custom_call.1} parent=31 // pred_region
        %s1905 = smul.u32 10, %s19
      $region36: #{tpu_custom_call.1} parent=31 // pred_fallthru
        _
    $region32: #{tpu_custom_call.1} parent=5 // pred_fallthru
      _
    %p1906 = scmp.le.s32.totalorder 2, %s9
    // Predicated region
    $region37: #{tpu_custom_call.1} parent=5 // pred_check
      %p1907 = pneg %p1906
    $region38: #{tpu_custom_call.1} parent=5 // pred_check_branch
      %1909 = sbr.rel (%p1907) target = $region40
    $region39: #{tpu_custom_call.1} parent=5 // pred_region
      %s1910 = ssub.s32 %s9, 2
      // Predicated region
      $region41: #{tpu_custom_call.1} parent=39 // pred_check
        %p1911 = pneg %p120
      $region42: #{tpu_custom_call.1} parent=39 // pred_check_branch
        %1913 = sbr.rel (%p1911) target = $region44
      $region43: #{tpu_custom_call.1} parent=39 // pred_region
        %s1914 = smul.u32 10, %s21
        %p1915 = scmp.lt.s32.totalorder %s20, 1
        %s1916 = scalar_select %p1915, %s20, 1
        %p1917 = scmp.lt.s32.totalorder %s1914, 39
        %s1918 = scalar_select %p1917, %s1914, 39
        %s1919 = smul.addr %s1916, 40
        %s1920 = sadd.s32 %s1918, %s1919
        %s1921 = smul.addr %s1920, 8
        %s1922 = scalar_lea.vmem %s3, %s1921
      $region44: #{tpu_custom_call.1} parent=39 // pred_fallthru
        _
    $region40: #{tpu_custom_call.1} parent=5 // pred_fallthru
      _
  $region6: #{tpu_custom_call.1} parent=0 // loop_footer
    %s13 = sadd.s32 1, %s9
  $region7: #{tpu_custom_call.1} parent=0 // loop_footer_branch
    %8 = sbr.rel target = $region3
  $region8: #{tpu_custom_call.1} parent=0 // loop_exit
    _

</llo_original>
